<compile_context>
chip_gen: v7x
topology: tpu7x:2x2x1
jax: 0.10.0
libtpu: 0.0.40
codegen_flags: <defaults>
</compile_context>

<pallas_src>
import functools

import numpy as np
import jax
import jax.numpy as jnp
from jax import lax
from jax.experimental import pallas as pl
from jax.experimental.pallas import tpu as pltpu

N_BINS = 10
_LANES = 128          # bins live on the lane axis of one vreg row
_NUM_CORES = 2        # v7x has 2 TensorCores; harmless serial split on v5e/v6e


def _ece_kernel(probs_ref, labels_ref, bins_ref, *,
                n_rows, tile_n, tiles_per_core, needs_mask):
    core = pl.program_id(0)
    t = pl.program_id(1)

    @pl.when(t == 0)
    def _init():
        bins_ref[...] = jnp.zeros_like(bins_ref)

    probs = probs_ref[...]                                   # (T, C) f32
    labels = labels_ref[...].astype(jnp.int32)               # (T, 1) widened in-kernel
    t_rows, n_cls = probs.shape

    # confidences, predictions = torch.max(probs, 1)  (first-index tie-break)
    conf = jnp.max(probs, axis=1, keepdims=True)                             # (T,1)
    class_iota = lax.broadcasted_iota(jnp.int32, (t_rows, n_cls), 1)
    pred = jnp.min(jnp.where(probs == conf, class_iota, n_cls),
                   axis=1, keepdims=True)                                    # (T,1)
    acc = (pred == labels).astype(jnp.float32)                               # (T,1)

    if needs_mask:
        # Guard padded / duplicated (clamped index) rows of the last blocks.
        row_iota = lax.broadcasted_iota(jnp.int32, (t_rows, 1), 0)
        base = (core * tiles_per_core + t) * tile_n
        valid = (base + row_iota) < n_rows
        conf_m = jnp.where(valid, conf, jnp.float32(-1.0))    # -1 falls in no bin
    else:
        conf_m = conf

    # Bin boundaries built in-kernel (bins on the lane axis, pad lanes inert).
    lane = lax.broadcasted_iota(jnp.int32, (1, _LANES), 1)
    lane_f = lane.astype(jnp.float32)
    is_bin = lane < N_BINS
    lo = jnp.where(is_bin, lane_f / jnp.float32(N_BINS), jnp.float32(2.0))
    hi = jnp.where(is_bin, (lane_f + 1.0) / jnp.float32(N_BINS), jnp.float32(3.0))
    in_bin = jnp.logical_and(conf_m > lo, conf_m <= hi).astype(jnp.float32)  # (T,128)

    # Stats matrix (T, 8): col0 = 1 (count), col1 = conf, col2 = acc, rest 0.
    col = lax.broadcasted_iota(jnp.int32, (t_rows, 8), 1)
    stats = jnp.where(col == 0, jnp.float32(1.0),
            jnp.where(col == 1, conf_m,
            jnp.where(col == 2, acc, jnp.float32(0.0))))                     # (T,8)

    # One MXU contraction over T -> (8, 128) [counts; sum_conf; sum_acc; 0...].
    partial = lax.dot_general(
        stats, in_bin,
        dimension_numbers=(((0,), (0,)), ((), ())),
        preferred_element_type=jnp.float32,
        precision=jax.lax.Precision.HIGHEST,
    )
    bins_ref[...] += partial[None, :, :]


def ece_loss(probs, labels, tile_n=None):
    """probs: (N, C) float32 normalized probabilities; labels: (N,) int class ids."""
    n, c = probs.shape
    probs = probs.astype(jnp.float32)

    # Shrink labels for HBM traffic; widened back to int32 inside the kernel.
    if c <= 127:
        ldtype = jnp.int8
    elif c <= 32767:
        ldtype = jnp.int16
    else:
        ldtype = jnp.int32
    labels_2d = labels.astype(ldtype).reshape(n, 1)

    padded_c = ((c + 127) // 128) * 128     # lane dim pads to 128 in VMEM/HBM tiles

    if tile_n is None:
        # ~4 MiB of padded probs per buffer, capped at 4096 rows.
        tile_n = min(4096, max(256, (4 * 1024 * 1024) // (4 * padded_c)))
    tile_n = int(tile_n)
    if tile_n >= n:
        tile_n = n                           # full-height block: no alignment needed
    else:
        tile_n = max(32, (tile_n // 32) * 32)  # multiple of 32 (covers int8 packing)

    num_tiles = pl.cdiv(n, tile_n)
    tiles_per_core = pl.cdiv(num_tiles, _NUM_CORES)
    # Mask needed if the last block is ragged OR a core re-reads a clamped block.
    needs_mask = (_NUM_CORES * tiles_per_core * tile_n) != n

    def block_index(core, t):
        # Clamp so duplicated blocks stay in bounds; their rows are masked out.
        return jnp.minimum(core * tiles_per_core + t, num_tiles - 1)

    kernel = functools.partial(
        _ece_kernel, n_rows=n, tile_n=tile_n,
        tiles_per_core=tiles_per_core, needs_mask=needs_mask)

    label_row_bytes = _LANES * jnp.dtype(ldtype).itemsize   # padded to 128 lanes
    cost = pl.CostEstimate(
        flops=int(n * (4 * c + 4 * _LANES + 2 * 8 * _LANES)),
        transcendentals=0,
        bytes_accessed=int(n * padded_c * 4 + n * label_row_bytes
                           + _NUM_CORES * 8 * _LANES * 4),
    )

    partials = pl.pallas_call(
        kernel,
        out_shape=jax.ShapeDtypeStruct((_NUM_CORES, 8, _LANES), jnp.float32),
        grid=(_NUM_CORES, tiles_per_core),
        in_specs=[
            pl.BlockSpec((tile_n, c), lambda core, t: (block_index(core, t), 0)),
            pl.BlockSpec((tile_n, 1), lambda core, t: (block_index(core, t), 0)),
        ],
        out_specs=pl.BlockSpec((1, 8, _LANES), lambda core, t: (core, 0, 0)),
        compiler_params=pltpu.CompilerParams(
            dimension_semantics=("parallel", "arbitrary"),
            vmem_limit_bytes=48 * 1024 * 1024,   # under v7x's 64 MiB physical VMEM
        ),
        cost_estimate=cost,
    )(probs, labels_2d)

    # Tiny 10-bin finalize in plain JAX (combines per-core partial bins).
    bins = jnp.sum(partials, axis=0)             # (8, 128)
    counts = bins[0, :N_BINS]
    s_conf = bins[1, :N_BINS]
    s_acc = bins[2, :N_BINS]
    safe = jnp.maximum(counts, 1.0)
    prop = counts / jnp.float32(n)
    gap = jnp.abs(s_conf / safe - s_acc / safe)
    ece = jnp.sum(jnp.where(counts > 0.0, gap * prop, 0.0))
    return ece.reshape(1)                        # matches torch.zeros(1) accumulator


def _ece_reference(probs, labels):
    conf = jnp.max(probs, axis=1)
    pred = jnp.argmax(probs, axis=1)
    acc = (pred == labels).astype(jnp.float32)
    bounds = np.linspace(0.0, 1.0, N_BINS + 1).astype(np.float32)
    ece = 0.0
    for b in range(N_BINS):
        in_bin = (conf > float(bounds[b])) & (conf <= float(bounds[b + 1]))
        m = in_bin.astype(jnp.float32)
        count = jnp.sum(m)
        prop = count / probs.shape[0]
        sc = jnp.maximum(count, 1.0)
        contrib = jnp.abs(jnp.sum(conf * m) / sc - jnp.sum(acc * m) / sc) * prop
        ece = ece + jnp.where(count > 0, contrib, 0.0)
    return jnp.reshape(ece, (1,))


if __name__ == "__main__":
    key = jax.random.PRNGKey(0)
    k1, k2 = jax.random.split(key)
    n, c = 300, 16
    logits = jax.random.normal(k1, (n, c), dtype=jnp.float32)
    probs = jax.nn.softmax(logits, axis=1)          # module expects normalized probs
    labels = jax.random.randint(k2, (n,), 0, c, dtype=jnp.int32)

    ref = _ece_reference(probs, labels)

    # Tiled path: 300 rows -> tiles 0,1 on core 0; tile 2 + masked duplicate on core 1.
    ece = ece_loss(probs, labels, tile_n=128)
    jax.block_until_ready(ece)
    np.testing.assert_allclose(np.asarray(ece), np.asarray(ref), rtol=1e-5, atol=1e-5)

    # Default auto-tiled path (single full-height block, duplicated block masked).
    ece2 = ece_loss(probs, labels)
    jax.block_until_ready(ece2)
    np.testing.assert_allclose(np.asarray(ece2), np.asarray(ref), rtol=1e-5, atol=1e-5)

    print("KERNEL_OK")
</pallas_src>

<mosaic_0001>
module attributes {stable_mosaic.version = 11 : i64} {
  func.func @_ece_kernel(%arg0: i32, %arg1: i32, %arg2: memref<128x16xf32, #tpu.memory_space<vmem>>, %arg3: memref<128x1xi8, #tpu.memory_space<vmem>>, %arg4: memref<1x8x128xf32, #tpu.memory_space<vmem>>) attributes {dimension_semantics = [#tpu.dimension_semantics<parallel>, #tpu.dimension_semantics<arbitrary>], iteration_bounds = array<i64: 2, 2>, scalar_prefetch = 0 : i64, scratch_operands = 0 : i64, tpu.core_type = #tpu.core_type<tc>, window_params = [{transform_indices = @transform_0, window_bounds = array<i64: 128, 16>}, {transform_indices = @transform_1, window_bounds = array<i64: 128, 1>}, {transform_indices = @transform_2, window_bounds = array<i64: 1, 8, 128>}]} {
    %c0_i32 = arith.constant 0 : i32
    %0 = arith.cmpi eq, %arg1, %c0_i32 : i32
    %1 = arith.extui %0 : i1 to i32
    %c0_i32_0 = arith.constant 0 : i32
    %2 = arith.cmpi ne, %1, %c0_i32_0 : i32
    scf.if %2 {
      %cst_22 = arith.constant 0.000000e+00 : f32
      %72 = vector.broadcast %cst_22 : f32 to vector<1x8x128xf32>
      %c0_23 = arith.constant 0 : index
      %c0_24 = arith.constant 0 : index
      %c0_25 = arith.constant 0 : index
      %73 = vector.load %arg4[%c0_23, %c0_24, %c0_25] : memref<1x8x128xf32, #tpu.memory_space<vmem>>, vector<1x8x128xf32>
      tpu.vector_store %arg4[%c0_23, %c0_24, %c0_25], %72 {strides = array<i32>} : memref<1x8x128xf32, #tpu.memory_space<vmem>>, vector<1x8x128xf32>,
    } else {
    }
    %c0 = arith.constant 0 : index
    %c0_1 = arith.constant 0 : index
    %3 = vector.load %arg2[%c0, %c0_1] : memref<128x16xf32, #tpu.memory_space<vmem>>, vector<128x16xf32>
    %c0_2 = arith.constant 0 : index
    %c0_3 = arith.constant 0 : index
    %4 = vector.load %arg3[%c0_2, %c0_3] : memref<128x1xi8, #tpu.memory_space<vmem>>, vector<128x1xi8>
    %5 = arith.extsi %4 : vector<128x1xi8> to vector<128x1xi32>
    %cst = arith.constant dense<0xFF800000> : vector<128xf32>
    %6 = vector.multi_reduction <maximumf>, %3, %cst [1] : vector<128x16xf32> to vector<128xf32>
    %7 = vector.shape_cast %6 : vector<128xf32> to vector<128x1xf32>
    %8 = tpu.iota {dimensions = array<i32: 1>} : vector<128x16xi32>
    %9 = vector.broadcast %7 : vector<128x1xf32> to vector<128x16xf32>
    %10 = arith.cmpf oeq, %3, %9 : vector<128x16xf32>
    %c16_i32 = arith.constant 16 : i32
    %11 = vector.broadcast %c16_i32 : i32 to vector<128x16xi32>
    %12 = arith.select %10, %8, %11 : vector<128x16xi1>, vector<128x16xi32>
    %cst_4 = arith.constant dense<2147483647> : vector<128xi32>
    %13 = vector.multi_reduction <minsi>, %12, %cst_4 [1] : vector<128x16xi32> to vector<128xi32>
    %14 = vector.shape_cast %13 : vector<128xi32> to vector<128x1xi32>
    %15 = arith.cmpi eq, %14, %5 : vector<128x1xi32>
    %16 = arith.extui %15 : vector<128x1xi1> to vector<128x1xi32>
    %17 = arith.sitofp %16 : vector<128x1xi32> to vector<128x1xf32>
    %18 = tpu.iota {dimensions = array<i32: 0>} : vector<128x1xi32>
    %c2_i32 = arith.constant 2 : i32
    %19 = arith.muli %arg0, %c2_i32 : i32
    %20 = arith.addi %19, %arg1 : i32
    %c128_i32 = arith.constant 128 : i32
    %21 = arith.muli %20, %c128_i32 : i32
    %22 = vector.broadcast %21 : i32 to vector<128x1xi32>
    %23 = arith.addi %22, %18 : vector<128x1xi32>
    %c300_i32 = arith.constant 300 : i32
    %24 = vector.broadcast %c300_i32 : i32 to vector<128x1xi32>
    %25 = arith.cmpi slt, %23, %24 : vector<128x1xi32>
    %cst_5 = arith.constant -1.000000e+00 : f32
    %26 = vector.broadcast %cst_5 : f32 to vector<128x1xf32>
    %27 = arith.select %25, %7, %26 : vector<128x1xi1>, vector<128x1xf32>
    %28 = tpu.iota {dimensions = array<i32: 1>} : vector<1x128xi32>
    %29 = arith.sitofp %28 : vector<1x128xi32> to vector<1x128xf32>
    %c10_i32 = arith.constant 10 : i32
    %30 = vector.broadcast %c10_i32 : i32 to vector<1x128xi32>
    %31 = arith.cmpi slt, %28, %30 : vector<1x128xi32>
    %cst_6 = arith.constant 1.000000e+01 : f32
    %32 = vector.broadcast %cst_6 : f32 to vector<1x128xf32>
    %33 = arith.divf %29, %32 : vector<1x128xf32>
    %cst_7 = arith.constant 2.000000e+00 : f32
    %34 = vector.broadcast %cst_7 : f32 to vector<1x128xf32>
    %35 = arith.select %31, %33, %34 : vector<1x128xi1>, vector<1x128xf32>
    %cst_8 = arith.constant 1.000000e+00 : f32
    %36 = vector.broadcast %cst_8 : f32 to vector<1x128xf32>
    %37 = arith.addf %29, %36 : vector<1x128xf32>
    %cst_9 = arith.constant 1.000000e+01 : f32
    %38 = vector.broadcast %cst_9 : f32 to vector<1x128xf32>
    %39 = arith.divf %37, %38 : vector<1x128xf32>
    %cst_10 = arith.constant 3.000000e+00 : f32
    %40 = vector.broadcast %cst_10 : f32 to vector<1x128xf32>
    %41 = arith.select %31, %39, %40 : vector<1x128xi1>, vector<1x128xf32>
    %42 = vector.broadcast %27 : vector<128x1xf32> to vector<128x128xf32>
    %43 = vector.broadcast %35 : vector<1x128xf32> to vector<128x128xf32>
    %44 = arith.cmpf ogt, %42, %43 : vector<128x128xf32>
    %45 = vector.broadcast %27 : vector<128x1xf32> to vector<128x128xf32>
    %46 = vector.broadcast %41 : vector<1x128xf32> to vector<128x128xf32>
    %47 = arith.cmpf ole, %45, %46 : vector<128x128xf32>
    %48 = arith.andi %44, %47 : vector<128x128xi1>
    %49 = arith.extui %48 : vector<128x128xi1> to vector<128x128xi32>
    %50 = arith.sitofp %49 : vector<128x128xi32> to vector<128x128xf32>
    %51 = tpu.iota {dimensions = array<i32: 1>} : vector<128x8xi32>
    %c0_i32_11 = arith.constant 0 : i32
    %52 = vector.broadcast %c0_i32_11 : i32 to vector<128x8xi32>
    %53 = arith.cmpi eq, %51, %52 : vector<128x8xi32>
    %c1_i32 = arith.constant 1 : i32
    %54 = vector.broadcast %c1_i32 : i32 to vector<128x8xi32>
    %55 = arith.cmpi eq, %51, %54 : vector<128x8xi32>
    %c2_i32_12 = arith.constant 2 : i32
    %56 = vector.broadcast %c2_i32_12 : i32 to vector<128x8xi32>
    %57 = arith.cmpi eq, %51, %56 : vector<128x8xi32>
    %cst_13 = arith.constant 0.000000e+00 : f32
    %58 = vector.shape_cast %17 : vector<128x1xf32> to vector<128x1xf32>
    %59 = vector.broadcast %58 : vector<128x1xf32> to vector<128x8xf32>
    %60 = vector.broadcast %cst_13 : f32 to vector<128x8xf32>
    %61 = arith.select %57, %59, %60 : vector<128x8xi1>, vector<128x8xf32>
    %62 = vector.shape_cast %27 : vector<128x1xf32> to vector<128x1xf32>
    %63 = vector.broadcast %62 : vector<128x1xf32> to vector<128x8xf32>
    %64 = arith.select %55, %63, %61 : vector<128x8xi1>, vector<128x8xf32>
    %cst_14 = arith.constant 1.000000e+00 : f32
    %65 = vector.broadcast %cst_14 : f32 to vector<128x8xf32>
    %66 = arith.select %53, %65, %64 : vector<128x8xi1>, vector<128x8xf32>
    %cst_15 = arith.constant dense<0.000000e+00> : vector<8x128xf32>
    %67 = tpu.matmul %66, %50, %cst_15 {dimension_numbers = #tpu.dot_dimension_numbers<[0], [0], [1], [1], [0, 1, 1, 1], [], []>, precision = #tpu.contract_precision<fp32>} : vector<128x8xf32>, vector<128x128xf32>, vector<8x128xf32> -> vector<8x128xf32>
    %c0_16 = arith.constant 0 : index
    %c0_17 = arith.constant 0 : index
    %c0_18 = arith.constant 0 : index
    %68 = vector.load %arg4[%c0_16, %c0_17, %c0_18] : memref<1x8x128xf32, #tpu.memory_space<vmem>>, vector<1x8x128xf32>
    %69 = vector.shape_cast %67 : vector<8x128xf32> to vector<1x8x128xf32>
    %70 = arith.addf %68, %69 : vector<1x8x128xf32>
    %c0_19 = arith.constant 0 : index
    %c0_20 = arith.constant 0 : index
    %c0_21 = arith.constant 0 : index
    %71 = vector.load %arg4[%c0_19, %c0_20, %c0_21] : memref<1x8x128xf32, #tpu.memory_space<vmem>>, vector<1x8x128xf32>
    tpu.vector_store %arg4[%c0_19, %c0_20, %c0_21], %70 {strides = array<i32>} : memref<1x8x128xf32, #tpu.memory_space<vmem>>, vector<1x8x128xf32>,
    return
  }
  func.func @transform_0(%arg0: i32, %arg1: i32) -> (i32, i32) {
    %c2_i32 = arith.constant 2 : i32
    %0 = arith.muli %arg0, %c2_i32 : i32
    %1 = arith.addi %0, %arg1 : i32
    %c2_i32_0 = arith.constant 2 : i32
    %2 = arith.minsi %1, %c2_i32_0 : i32
    %c0_i32 = arith.constant 0 : i32
    %c0_i32_1 = arith.constant 0 : i32
    return %2, %c0_i32 : i32, i32
  }
  func.func @transform_1(%arg0: i32, %arg1: i32) -> (i32, i32) {
    %c2_i32 = arith.constant 2 : i32
    %0 = arith.muli %arg0, %c2_i32 : i32
    %1 = arith.addi %0, %arg1 : i32
    %c2_i32_0 = arith.constant 2 : i32
    %2 = arith.minsi %1, %c2_i32_0 : i32
    %c0_i32 = arith.constant 0 : i32
    %c0_i32_1 = arith.constant 0 : i32
    return %2, %c0_i32 : i32, i32
  }
  func.func @transform_2(%arg0: i32, %arg1: i32) -> (i32, i32, i32) {
    %c0_i32 = arith.constant 0 : i32
    %c0_i32_0 = arith.constant 0 : i32
    %c0_i32_1 = arith.constant 0 : i32
    return %arg0, %c0_i32, %c0_i32_0 : i32, i32, i32
  }
}

</mosaic_0001>

<llo_original>
// kernel: tpu_custom_call.1
$region0: #{tpu_custom_call.1}
  #allocation0 [shape = 'u32[]', space=smem, size = 0x4, offset = 0x4, fixed_abs, tag = 'smem constant byte address 0x4 - core index']
  #allocation1 [shape = 'u32[144,128]{1,0:T(1,128)}', space=vmem, size = 0x12000, scoped, tag = 'internal scratch']
  %s0 = inlined_call_operand.vmem [shape: f32[300,16], index: 0, kind: input, shape index: {}]
  %s1 = inlined_call_operand.vmem [shape: s8[300,1], index: 1, kind: input, shape index: {}]
  %s2 = inlined_call_operand.hbm [shape: f32[2,8,128], index: 2, kind: output, shape index: {}]
  %s3 = sld [smem:[#allocation0]]
  $region45: #{tpu_custom_call.1} parent=0
    _
  %s5 = ssub.s32 1, %s3
  %s6 = scalar_select 0, %s5, %s3
  $region1: #{tpu_custom_call.1} parent=0
    #allocation2 [shape = 'u8[8192]{0}', space=vmem, size = 0x2000, scoped, tag = 'output window, operand 0']
    #allocation3 [shape = 's32[2]{0}', space=sflag, size = 0x8, scoped, tag = 'scoped memory for tpu_custom_call.1']
    %7 = vsyncpa [#allocation3], 0
    %s8 = scalar_lea.sflag [#allocation3], 1
    %9 = vsyncpa %s8, 0
    loop: start=0, step=1, limit=6
    $region2: #{tpu_custom_call.1} parent=1 // loop_pre_header
      _
    $region3: #{tpu_custom_call.1} parent=1 // loop_header
      %s11 = sphi 0, %s15
      %p12 = scmp.ge.s32.totalorder %s11, 6
      %s18 = sphi 0, %s30
      %s19 = sphi 0, %s26
      %s20 = sphi 0, %s18
      %s21 = sphi 0, %s19
      %s22 = sphi 0, %s20
      %s23 = sphi 0, %s21
      %s41 = sphi 0, %s43
      %s44 = sphi 0, %s41
      %s45 = sphi 0, %s44
      %s61 = sphi 0, %s45
      %s75 = sphi 0, %s77
      %s78 = sphi 0, %s75
      %s79 = sphi 0, %s78
      %s95 = sphi 0, %s79
      %s101 = sphi 0, %s103
      %s104 = sphi 0, %s101
      %s105 = sphi 0, %s104
      %s121 = sphi 0, %s105
    $region4: #{tpu_custom_call.1} parent=1 // loop_header_branch
      %14 = sbr.rel (%p12) target = $region8
    $region5: #{tpu_custom_call.1} parent=1 // loop_body
      %s16 = ssub.s32 %s11, 1
      %s17 = ssub.s32 %s11, 2
      %s24 = sadd.s32 1, %s19
      %p25 = scmp.ge.s32.totalorder %s24, 2
      %s26 = scalar_select %p25, 0, %s24
      %s27 = sadd.s32 1, %s18
      %s28 = scalar_select %p25, %s27, %s18
      %p29 = scmp.ge.s32.totalorder %s28, 2
      %s30 = scalar_select %p29, 0, %s28
      %s31 = smul.u32 %s18, 2
      %s32 = sadd.s32 %s31, %s19
      %p33 = scmp.lt.s32.totalorder %s32, 2
      %s34 = scalar_select %p33, %s32, 2
      %s35 = smul.u32 %s30, 2
      %s36 = sadd.s32 %s35, %s26
      %p37 = scmp.lt.s32.totalorder %s36, 2
      %s38 = scalar_select %p37, %s36, 2
      %s39 = ssub.s32 %s34, %s38
      %p40 = scmp.eq.s32.totalorder %s39, 0
      %s42 = sadd.s32 %s41, 1
      %s43 = scalar_select %p40, %s41, %s42
      %p46 = pneg %p40
      %p47 = scmp.eq.s32.totalorder %s11, 3
      %p48 = por %p46, %p47
      %p49 = scmp.ne.s32.totalorder %s41, %s44
      %p50 = scmp.eq.s32.totalorder %s11, 0
      %p51 = por %p49, %p50
      %p52 = scmp.ne.s32.totalorder %s41, %s44
      %p53 = scmp.eq.s32.totalorder %s16, 3
      %p54 = por %p52, %p53
      %p55 = scmp.ne.s32.totalorder %s44, %s45
      %p56 = scmp.eq.s32.totalorder %s16, 0
      %p57 = por %p55, %p56
      %p58 = scmp.ne.s32.totalorder %s44, %s45
      %p59 = scmp.eq.s32.totalorder %s17, 3
      %p60 = por %p58, %p59
      %p62 = scmp.ne.s32.totalorder %s45, %s61
      %p63 = scmp.eq.s32.totalorder %s17, 0
      %p64 = por %p62, %p63
      %s65 = smul.u32 %s18, 2
      %s66 = sadd.s32 %s65, %s19
      %p67 = scmp.lt.s32.totalorder %s66, 2
      %s68 = scalar_select %p67, %s66, 2
      %s69 = smul.u32 %s30, 2
      %s70 = sadd.s32 %s69, %s26
      %p71 = scmp.lt.s32.totalorder %s70, 2
      %s72 = scalar_select %p71, %s70, 2
      %s73 = ssub.s32 %s68, %s72
      %p74 = scmp.eq.s32.totalorder %s73, 0
      %s76 = sadd.s32 %s75, 1
      %s77 = scalar_select %p74, %s75, %s76
      %p80 = pneg %p74
      %p81 = scmp.eq.s32.totalorder %s11, 3
      %p82 = por %p80, %p81
      %p83 = scmp.ne.s32.totalorder %s75, %s78
      %p84 = scmp.eq.s32.totalorder %s11, 0
      %p85 = por %p83, %p84
      %p86 = scmp.ne.s32.totalorder %s75, %s78
      %p87 = scmp.eq.s32.totalorder %s16, 3
      %p88 = por %p86, %p87
      %p89 = scmp.ne.s32.totalorder %s78, %s79
      %p90 = scmp.eq.s32.totalorder %s16, 0
      %p91 = por %p89, %p90
      %p92 = scmp.ne.s32.totalorder %s78, %s79
      %p93 = scmp.eq.s32.totalorder %s17, 3
      %p94 = por %p92, %p93
      %p96 = scmp.ne.s32.totalorder %s79, %s95
      %p97 = scmp.eq.s32.totalorder %s17, 0
      %p98 = por %p96, %p97
      %s99 = ssub.s32 %s18, %s30
      %p100 = scmp.eq.s32.totalorder %s99, 0
      %s102 = sadd.s32 %s101, 1
      %s103 = scalar_select %p100, %s101, %s102
      %p106 = pneg %p100
      %p107 = scmp.eq.s32.totalorder %s11, 3
      %p108 = por %p106, %p107
      %p109 = scmp.ne.s32.totalorder %s101, %s104
      %p110 = scmp.eq.s32.totalorder %s11, 0
      %p111 = por %p109, %p110
      %p112 = scmp.ne.s32.totalorder %s101, %s104
      %p113 = scmp.eq.s32.totalorder %s16, 3
      %p114 = por %p112, %p113
      %p115 = scmp.ne.s32.totalorder %s104, %s105
      %p116 = scmp.eq.s32.totalorder %s16, 0
      %p117 = por %p115, %p116
      %p118 = scmp.ne.s32.totalorder %s104, %s105
      %p119 = scmp.eq.s32.totalorder %s17, 3
      %p120 = por %p118, %p119
      %p122 = scmp.ne.s32.totalorder %s105, %s121
      %p123 = scmp.eq.s32.totalorder %s17, 0
      %p124 = por %p122, %p123
      %p125 = scmp.le.s32.totalorder 1, %s11
      %p126 = scmp.lt.s32.totalorder %s11, 5
      %p127 = pnand %p125, %p126
      %p128 = pneg %p127
      // Predicated region
      $region9: #{tpu_custom_call.1} parent=5 // pred_check
        _
      $region10: #{tpu_custom_call.1} parent=5 // pred_check_branch
        %130 = sbr.rel (%p127) target = $region12
      $region11: #{tpu_custom_call.1} parent=5 // pred_region
        %s131 = ssub.s32 %s11, 1
      $region12: #{tpu_custom_call.1} parent=5 // pred_fallthru
        _
      %p132 = scmp.lt.s32.totalorder %s11, 4
      // Predicated region
      $region13: #{tpu_custom_call.1} parent=5 // pred_check
        %p133 = pneg %p132
      $region14: #{tpu_custom_call.1} parent=5 // pred_check_branch
        %135 = sbr.rel (%p133) target = $region16
      $region15: #{tpu_custom_call.1} parent=5 // pred_region
        // Predicated region
        $region17: #{tpu_custom_call.1} parent=15 // pred_check
          %p136 = pneg %p51
        $region18: #{tpu_custom_call.1} parent=15 // pred_check_branch
          %138 = sbr.rel (%p136) target = $region20
        $region19: #{tpu_custom_call.1} parent=15 // pred_region
          %s139 = smul.u32 %s18, 2
          %s140 = sadd.s32 %s139, %s19
          %p141 = scmp.lt.s32.totalorder %s140, 2
          %s142 = scalar_select %p141, %s140, 2
          %s143 = smul.u32 16, %s142
          %s144 = ssub.s32 38, %s143
          %p145 = scmp.lt.s32.totalorder %s144, 16
          %s146 = scalar_select %p145, %s144, 16
          %s147 = smul.u32 128, %s146
          %p148 = scmp.lt.s32.totalorder %s143, 37
          %s149 = scalar_select %p148, %s143, 37
          %s150 = smul.addr %s149, 8
          %s151 = scalar_lea.vmem %s0, %s150
          %s152 = smul.u32 %s18, 2
          %s153 = sadd.s32 %s152, %s19
          %p154 = scmp.lt.s32.totalorder %s153, 2
          %s155 = scalar_select %p154, %s153, 2
          %s156 = smul.u32 16, %s155
          %s157 = ssub.s32 38, %s156
          %p158 = scmp.lt.s32.totalorder %s157, 16
          %s159 = scalar_select %p158, %s157, 16
          %s160 = smul.u32 128, %s159
        $region20: #{tpu_custom_call.1} parent=15 // pred_fallthru
          _
        // Predicated region
        $region21: #{tpu_custom_call.1} parent=15 // pred_check
          %p161 = pneg %p85
        $region22: #{tpu_custom_call.1} parent=15 // pred_check_branch
          %163 = sbr.rel (%p161) target = $region24
        $region23: #{tpu_custom_call.1} parent=15 // pred_region
          %s164 = smul.u32 %s18, 2
          %s165 = sadd.s32 %s164, %s19
          %p166 = scmp.lt.s32.totalorder %s165, 2
          %s167 = scalar_select %p166, %s165, 2
          %s168 = smul.u32 16, %s167
          %s169 = ssub.s32 38, %s168
          %p170 = scmp.lt.s32.totalorder %s169, 16
          %s171 = scalar_select %p170, %s169, 16
          %s172 = smul.u32 32, %s171
          %p173 = scmp.lt.s32.totalorder %s168, 37
          %s174 = scalar_select %p173, %s168, 37
          %s175 = smul.addr %s174, 2
          %s176 = scalar_lea.vmem %s1, %s175
          %s177 = smul.u32 %s18, 2
          %s178 = sadd.s32 %s177, %s19
          %p179 = scmp.lt.s32.totalorder %s178, 2
          %s180 = scalar_select %p179, %s178, 2
          %s181 = smul.u32 16, %s180
          %s182 = ssub.s32 38, %s181
          %p183 = scmp.lt.s32.totalorder %s182, 16
          %s184 = scalar_select %p183, %s182, 16
          %s185 = smul.u32 32, %s184
        $region24: #{tpu_custom_call.1} parent=15 // pred_fallthru
          _
      $region16: #{tpu_custom_call.1} parent=5 // pred_fallthru
        _
      %p186 = scmp.le.s32.totalorder 1, %s11
      %p187 = scmp.lt.s32.totalorder %s11, 5
      %p188 = pnand %p186, %p187
      %p189 = pneg %p188
      // Predicated region
      $region25: #{tpu_custom_call.1} parent=5 // pred_check
        _
      $region26: #{tpu_custom_call.1} parent=5 // pred_check_branch
        %191 = sbr.rel (%p188) target = $region28
      $region27: #{tpu_custom_call.1} parent=5 // pred_region
        %s192 = ssub.s32 %s11, 1
        %s193 = smul.u32 %s20, 2
        %s194 = sadd.s32 %s193, %s21
        %p195 = scmp.lt.s32.totalorder %s194, 2
        %s196 = scalar_select %p195, %s194, 2
        %s197 = smul.u32 16, %s196
        %s198 = ssub.s32 38, %s197
        %p199 = scmp.lt.s32.totalorder %s198, 16
        %s200 = scalar_select %p199, %s198, 16
        %s201 = smul.u32 128, %s200
        %p202 = scmp.lt.s32.totalorder %s197, 37
        %s203 = scalar_select %p202, %s197, 37
        %s204 = smul.addr %s203, 8
        %s205 = scalar_lea.vmem %s0, %s204
        %p206 = pneg %p57
        %p207 = pneg %p54
        %s208 = smul.u32 %s20, 2
        %s209 = sadd.s32 %s208, %s21
        %p210 = scmp.lt.s32.totalorder %s209, 2
        %s211 = scalar_select %p210, %s209, 2
        %s212 = smul.u32 16, %s211
        %s213 = ssub.s32 38, %s212
        %p214 = scmp.lt.s32.totalorder %s213, 16
        %s215 = scalar_select %p214, %s213, 16
        %s216 = smul.u32 32, %s215
        %p217 = scmp.lt.s32.totalorder %s212, 37
        %s218 = scalar_select %p217, %s212, 37
        %s219 = smul.addr %s218, 2
        %s220 = scalar_lea.vmem %s1, %s219
        %p221 = pneg %p91
        %p222 = pneg %p88
        %p223 = pneg %p117
        %p224 = pneg %p114
        %s225 = sand.u32 %s104, 1
        %s226 = scalar_lea.sflag [#allocation3], %s225
        %s227 = sand.u32 %s104, 1
        %s228 = smul.addr %s227, 8
        %s229 = scalar_lea.vmem [#allocation2], %s228
        %s230 = smul.u32 %s20, 2
        %s231 = sadd.s32 %s230, %s21
        %p232 = scmp.lt.s32.totalorder %s231, 2
        %s233 = scalar_select %p232, %s231, 2
        %s234 = smul.u32 16, %s233
        %s235 = ssub.s32 38, %s234
        %p236 = scmp.lt.s32.totalorder %s235, 16
        %s237 = scalar_select %p236, %s235, 16
        %s238 = smul.u32 128, %s237
        %p239 = scmp.lt.s32.totalorder %s234, 37
        %s240 = scalar_select %p239, %s234, 37
        %s241 = smul.addr %s240, 8
        %s242 = scalar_lea.vmem %s0, %s241
        %s243 = smul.u32 %s20, 2
        %s244 = sadd.s32 %s243, %s21
        %p245 = scmp.lt.s32.totalorder %s244, 2
        %s246 = scalar_select %p245, %s244, 2
        %s247 = smul.u32 16, %s246
        %s248 = ssub.s32 38, %s247
        %p249 = scmp.lt.s32.totalorder %s248, 16
        %s250 = scalar_select %p249, %s248, 16
        %s251 = smul.u32 128, %s250
        %s252 = smul.u32 %s20, 2
        %s253 = sadd.s32 %s252, %s21
        %p254 = scmp.lt.s32.totalorder %s253, 2
        %s255 = scalar_select %p254, %s253, 2
        %s256 = smul.u32 16, %s255
        %s257 = ssub.s32 38, %s256
        %p258 = scmp.lt.s32.totalorder %s257, 16
        %s259 = scalar_select %p258, %s257, 16
        %s260 = smul.u32 32, %s259
        %p261 = scmp.lt.s32.totalorder %s256, 37
        %s262 = scalar_select %p261, %s256, 37
        %s263 = smul.addr %s262, 2
        %s264 = scalar_lea.vmem %s1, %s263
        %s265 = smul.u32 %s20, 2
        %s266 = sadd.s32 %s265, %s21
        %p267 = scmp.lt.s32.totalorder %s266, 2
        %s268 = scalar_select %p267, %s266, 2
        %s269 = smul.u32 16, %s268
        %s270 = ssub.s32 38, %s269
        %p271 = scmp.lt.s32.totalorder %s270, 16
        %s272 = scalar_select %p271, %s270, 16
        %s273 = smul.u32 32, %s272
        %p274 = scmp.eq.s32.totalorder %s21, 0
        // Predicated region
        $region29: #{tpu_custom_call.1} parent=27 // pred_check
          %p275 = pneg %p274
        $region30: #{tpu_custom_call.1} parent=27 // pred_check_branch
          %277 = sbr.rel (%p275) target = $region32
        $region31: #{tpu_custom_call.1} parent=27 // pred_region
          %278 = vst [vmem:[%s229] sm:$0xff] 0.0
        $region32: #{tpu_custom_call.1} parent=27 // pred_fallthru
          _
        %v279 = vld [vmem:[%s242] sm:$0xff]
        %v280 = vld [vmem:[%s242 + $0x8] sm:$0xff]
        %v281 = vld [vmem:[%s242 + $0x10] sm:$0xff]
        %v282 = vld [vmem:[%s242 + $0x18] sm:$0xff]
        %v283 = vld [vmem:[%s242 + $0x20] sm:$0xff]
        %v284 = vld [vmem:[%s242 + $0x28] sm:$0xff]
        %v285 = vld [vmem:[%s242 + $0x30] sm:$0xff]
        %v286 = vld [vmem:[%s242 + $0x38] sm:$0xff]
        %v287 = vld [vmem:[%s242 + $0x40] sm:$0xff]
        %v288 = vld [vmem:[%s242 + $0x48] sm:$0xff]
        %v289 = vld [vmem:[%s242 + $0x50] sm:$0xff]
        %v290 = vld [vmem:[%s242 + $0x58] sm:$0xff]
        %v291 = vld [vmem:[%s242 + $0x60] sm:$0xff]
        %v292 = vld [vmem:[%s242 + $0x68] sm:$0xff]
        %v293 = vld [vmem:[%s242 + $0x70] sm:$0xff]
        %v294 = vld [vmem:[%s242 + $0x78] sm:$0xff]
        %v295 = vld [vmem:[%s264] sm:$0x3]
        %v296 = vld [vmem:[%s264 + $0x2] sm:$0x3]
        %v297 = vld [vmem:[%s264 + $0x4] sm:$0x3]
        %v298 = vld [vmem:[%s264 + $0x6] sm:$0x3]
        %v299 = vld [vmem:[%s264 + $0x8] sm:$0x3]
        %v300 = vld [vmem:[%s264 + $0xa] sm:$0x3]
        %v301 = vld [vmem:[%s264 + $0xc] sm:$0x3]
        %v302 = vld [vmem:[%s264 + $0xe] sm:$0x3]
        %v303 = vld [vmem:[%s264 + $0x10] sm:$0x3]
        %v304 = vld [vmem:[%s264 + $0x12] sm:$0x3]
        %v305 = vld [vmem:[%s264 + $0x14] sm:$0x3]
        %v306 = vld [vmem:[%s264 + $0x16] sm:$0x3]
        %v307 = vld [vmem:[%s264 + $0x18] sm:$0x3]
        %v308 = vld [vmem:[%s264 + $0x1a] sm:$0x3]
        %v309 = vld [vmem:[%s264 + $0x1c] sm:$0x3]
        %v310 = vld [vmem:[%s264 + $0x1e] sm:$0x3]
        %v311 = vunpack.c.0.s8 %v295
        %v312 = vunpack.c.0.s8 %v296
        %v313 = vunpack.c.0.s8 %v297
        %v314 = vunpack.c.0.s8 %v298
        %v315 = vunpack.c.0.s8 %v299
        %v316 = vunpack.c.0.s8 %v300
        %v317 = vunpack.c.0.s8 %v301
        %v318 = vunpack.c.0.s8 %v302
        %v319 = vunpack.c.0.s8 %v303
        %v320 = vunpack.c.0.s8 %v304
        %v321 = vunpack.c.0.s8 %v305
        %v322 = vunpack.c.0.s8 %v306
        %v323 = vunpack.c.0.s8 %v307
        %v324 = vunpack.c.0.s8 %v308
        %v325 = vunpack.c.0.s8 %v309
        %v326 = vunpack.c.0.s8 %v310
        %vm327 = vcmask 130048
        %v328 = vsel %vm327, %v279, -inf
        %329 = vmax.xlane.f32.xlu0 %v328
        %v330 = vpop.xlane.xlu0 %329
        %v331 = vsel %vm327, %v280, -inf
        %332 = vmax.xlane.f32.xlu0 %v331
        %v333 = vpop.xlane.xlu0 %332
        %v334 = vsel %vm327, %v281, -inf
        %335 = vmax.xlane.f32.xlu0 %v334
        %v336 = vpop.xlane.xlu0 %335
        %v337 = vsel %vm327, %v282, -inf
        %338 = vmax.xlane.f32.xlu0 %v337
        %v339 = vpop.xlane.xlu0 %338
        %v340 = vsel %vm327, %v283, -inf
        %341 = vmax.xlane.f32.xlu0 %v340
        %v342 = vpop.xlane.xlu0 %341
        %v343 = vsel %vm327, %v284, -inf
        %344 = vmax.xlane.f32.xlu0 %v343
        %v345 = vpop.xlane.xlu0 %344
        %v346 = vsel %vm327, %v285, -inf
        %347 = vmax.xlane.f32.xlu0 %v346
        %v348 = vpop.xlane.xlu0 %347
        %v349 = vsel %vm327, %v286, -inf
        %350 = vmax.xlane.f32.xlu0 %v349
        %v351 = vpop.xlane.xlu0 %350
        %v352 = vsel %vm327, %v287, -inf
        %353 = vmax.xlane.f32.xlu0 %v352
        %v354 = vpop.xlane.xlu0 %353
        %v355 = vsel %vm327, %v288, -inf
        %356 = vmax.xlane.f32.xlu0 %v355
        %v357 = vpop.xlane.xlu0 %356
        %v358 = vsel %vm327, %v289, -inf
        %359 = vmax.xlane.f32.xlu0 %v358
        %v360 = vpop.xlane.xlu0 %359
        %v361 = vsel %vm327, %v290, -inf
        %362 = vmax.xlane.f32.xlu0 %v361
        %v363 = vpop.xlane.xlu0 %362
        %v364 = vsel %vm327, %v291, -inf
        %365 = vmax.xlane.f32.xlu0 %v364
        %v366 = vpop.xlane.xlu0 %365
        %v367 = vsel %vm327, %v292, -inf
        %368 = vmax.xlane.f32.xlu0 %v367
        %v369 = vpop.xlane.xlu0 %368
        %v370 = vsel %vm327, %v293, -inf
        %371 = vmax.xlane.f32.xlu0 %v370
        %v372 = vpop.xlane.xlu0 %371
        %v373 = vsel %vm327, %v294, -inf
        %374 = vmax.xlane.f32.xlu0 %v373
        %v375 = vpop.xlane.xlu0 %374
        %v376 = vlaneseq
        %v377 = vand.u32 %v376, 127
        %vm378 = vcmp.eq.f32.partialorder %v279, %v330
        %vm379 = vcmp.eq.f32.partialorder %v280, %v333
        %vm380 = vcmp.eq.f32.partialorder %v281, %v336
        %vm381 = vcmp.eq.f32.partialorder %v282, %v339
        %vm382 = vcmp.eq.f32.partialorder %v283, %v342
        %vm383 = vcmp.eq.f32.partialorder %v284, %v345
        %vm384 = vcmp.eq.f32.partialorder %v285, %v348
        %vm385 = vcmp.eq.f32.partialorder %v286, %v351
        %vm386 = vcmp.eq.f32.partialorder %v287, %v354
        %vm387 = vcmp.eq.f32.partialorder %v288, %v357
        %vm388 = vcmp.eq.f32.partialorder %v289, %v360
        %vm389 = vcmp.eq.f32.partialorder %v290, %v363
        %vm390 = vcmp.eq.f32.partialorder %v291, %v366
        %vm391 = vcmp.eq.f32.partialorder %v292, %v369
        %vm392 = vcmp.eq.f32.partialorder %v293, %v372
        %vm393 = vcmp.eq.f32.partialorder %v294, %v375
        %v394 = vsel %vm378, %v377, 16
        %v395 = vsel %vm379, %v377, 16
        %v396 = vsel %vm380, %v377, 16
        %v397 = vsel %vm381, %v377, 16
        %v398 = vsel %vm382, %v377, 16
        %v399 = vsel %vm383, %v377, 16
        %v400 = vsel %vm384, %v377, 16
        %v401 = vsel %vm385, %v377, 16
        %v402 = vsel %vm386, %v377, 16
        %v403 = vsel %vm387, %v377, 16
        %v404 = vsel %vm388, %v377, 16
        %v405 = vsel %vm389, %v377, 16
        %v406 = vsel %vm390, %v377, 16
        %v407 = vsel %vm391, %v377, 16
        %v408 = vsel %vm392, %v377, 16
        %v409 = vsel %vm393, %v377, 16
        %v410 = vsel %vm327, %v394, 2147483647
        %v411 = vand.u32 %v410, 65535
        %v412 = vshra.s32 %v410, 16
        %v413 = vcvt.s32.f32 %v411
        %v414 = vcvt.s32.f32 %v412
        %415 = vmin.xlane.f32.xlu0 %v414
        %v416 = vpop.xlane.xlu0 %415
        %vm417 = vcmp.eq.f32.partialorder %v414, %v416
        %v418 = vsel %vm417, %v413, inf
        %419 = vmin.xlane.f32.xlu0 %v418
        %v420 = vpop.xlane.xlu0 %419
        %v421 = vcvt.f32.s32 %v420
        %v422 = vcvt.f32.s32 %v416
        %v423 = vshll.u32 %v422, 16
        %v424 = vadd.s32 %v423, %v421
        %v425 = vsel %vm327, %v395, 2147483647
        %v426 = vand.u32 %v425, 65535
        %v427 = vshra.s32 %v425, 16
        %v428 = vcvt.s32.f32 %v426
        %v429 = vcvt.s32.f32 %v427
        %430 = vmin.xlane.f32.xlu0 %v429
        %v431 = vpop.xlane.xlu0 %430
        %vm432 = vcmp.eq.f32.partialorder %v429, %v431
        %v433 = vsel %vm432, %v428, inf
        %434 = vmin.xlane.f32.xlu0 %v433
        %v435 = vpop.xlane.xlu0 %434
        %v436 = vcvt.f32.s32 %v435
        %v437 = vcvt.f32.s32 %v431
        %v438 = vshll.u32 %v437, 16
        %v439 = vadd.s32 %v438, %v436
        %v440 = vsel %vm327, %v396, 2147483647
        %v441 = vand.u32 %v440, 65535
        %v442 = vshra.s32 %v440, 16
        %v443 = vcvt.s32.f32 %v441
        %v444 = vcvt.s32.f32 %v442
        %445 = vmin.xlane.f32.xlu0 %v444
        %v446 = vpop.xlane.xlu0 %445
        %vm447 = vcmp.eq.f32.partialorder %v444, %v446
        %v448 = vsel %vm447, %v443, inf
        %449 = vmin.xlane.f32.xlu0 %v448
        %v450 = vpop.xlane.xlu0 %449
        %v451 = vcvt.f32.s32 %v450
        %v452 = vcvt.f32.s32 %v446
        %v453 = vshll.u32 %v452, 16
        %v454 = vadd.s32 %v453, %v451
        %v455 = vsel %vm327, %v397, 2147483647
        %v456 = vand.u32 %v455, 65535
        %v457 = vshra.s32 %v455, 16
        %v458 = vcvt.s32.f32 %v456
        %v459 = vcvt.s32.f32 %v457
        %460 = vmin.xlane.f32.xlu0 %v459
        %v461 = vpop.xlane.xlu0 %460
        %vm462 = vcmp.eq.f32.partialorder %v459, %v461
        %v463 = vsel %vm462, %v458, inf
        %464 = vmin.xlane.f32.xlu0 %v463
        %v465 = vpop.xlane.xlu0 %464
        %v466 = vcvt.f32.s32 %v465
        %v467 = vcvt.f32.s32 %v461
        %v468 = vshll.u32 %v467, 16
        %v469 = vadd.s32 %v468, %v466
        %v470 = vsel %vm327, %v398, 2147483647
        %v471 = vand.u32 %v470, 65535
        %v472 = vshra.s32 %v470, 16
        %v473 = vcvt.s32.f32 %v471
        %v474 = vcvt.s32.f32 %v472
        %475 = vmin.xlane.f32.xlu0 %v474
        %v476 = vpop.xlane.xlu0 %475
        %vm477 = vcmp.eq.f32.partialorder %v474, %v476
        %v478 = vsel %vm477, %v473, inf
        %479 = vmin.xlane.f32.xlu0 %v478
        %v480 = vpop.xlane.xlu0 %479
        %v481 = vcvt.f32.s32 %v480
        %v482 = vcvt.f32.s32 %v476
        %v483 = vshll.u32 %v482, 16
        %v484 = vadd.s32 %v483, %v481
        %v485 = vsel %vm327, %v399, 2147483647
        %v486 = vand.u32 %v485, 65535
        %v487 = vshra.s32 %v485, 16
        %v488 = vcvt.s32.f32 %v486
        %v489 = vcvt.s32.f32 %v487
        %490 = vmin.xlane.f32.xlu0 %v489
        %v491 = vpop.xlane.xlu0 %490
        %vm492 = vcmp.eq.f32.partialorder %v489, %v491
        %v493 = vsel %vm492, %v488, inf
        %494 = vmin.xlane.f32.xlu0 %v493
        %v495 = vpop.xlane.xlu0 %494
        %v496 = vcvt.f32.s32 %v495
        %v497 = vcvt.f32.s32 %v491
        %v498 = vshll.u32 %v497, 16
        %v499 = vadd.s32 %v498, %v496
        %v500 = vsel %vm327, %v400, 2147483647
        %v501 = vand.u32 %v500, 65535
        %v502 = vshra.s32 %v500, 16
        %v503 = vcvt.s32.f32 %v501
        %v504 = vcvt.s32.f32 %v502
        %505 = vmin.xlane.f32.xlu0 %v504
        %v506 = vpop.xlane.xlu0 %505
        %vm507 = vcmp.eq.f32.partialorder %v504, %v506
        %v508 = vsel %vm507, %v503, inf
        %509 = vmin.xlane.f32.xlu0 %v508
        %v510 = vpop.xlane.xlu0 %509
        %v511 = vcvt.f32.s32 %v510
        %v512 = vcvt.f32.s32 %v506
        %v513 = vshll.u32 %v512, 16
        %v514 = vadd.s32 %v513, %v511
        %v515 = vsel %vm327, %v401, 2147483647
        %v516 = vand.u32 %v515, 65535
        %v517 = vshra.s32 %v515, 16
        %v518 = vcvt.s32.f32 %v516
        %v519 = vcvt.s32.f32 %v517
        %520 = vmin.xlane.f32.xlu0 %v519
        %v521 = vpop.xlane.xlu0 %520
        %vm522 = vcmp.eq.f32.partialorder %v519, %v521
        %v523 = vsel %vm522, %v518, inf
        %524 = vmin.xlane.f32.xlu0 %v523
        %v525 = vpop.xlane.xlu0 %524
        %v526 = vcvt.f32.s32 %v525
        %v527 = vcvt.f32.s32 %v521
        %v528 = vshll.u32 %v527, 16
        %v529 = vadd.s32 %v528, %v526
        %v530 = vsel %vm327, %v402, 2147483647
        %v531 = vand.u32 %v530, 65535
        %v532 = vshra.s32 %v530, 16
        %v533 = vcvt.s32.f32 %v531
        %v534 = vcvt.s32.f32 %v532
        %535 = vmin.xlane.f32.xlu0 %v534
        %v536 = vpop.xlane.xlu0 %535
        %vm537 = vcmp.eq.f32.partialorder %v534, %v536
        %v538 = vsel %vm537, %v533, inf
        %539 = vmin.xlane.f32.xlu0 %v538
        %v540 = vpop.xlane.xlu0 %539
        %v541 = vcvt.f32.s32 %v540
        %v542 = vcvt.f32.s32 %v536
        %v543 = vshll.u32 %v542, 16
        %v544 = vadd.s32 %v543, %v541
        %v545 = vsel %vm327, %v403, 2147483647
        %v546 = vand.u32 %v545, 65535
        %v547 = vshra.s32 %v545, 16
        %v548 = vcvt.s32.f32 %v546
        %v549 = vcvt.s32.f32 %v547
        %550 = vmin.xlane.f32.xlu0 %v549
        %v551 = vpop.xlane.xlu0 %550
        %vm552 = vcmp.eq.f32.partialorder %v549, %v551
        %v553 = vsel %vm552, %v548, inf
        %554 = vmin.xlane.f32.xlu0 %v553
        %v555 = vpop.xlane.xlu0 %554
        %v556 = vcvt.f32.s32 %v555
        %v557 = vcvt.f32.s32 %v551
        %v558 = vshll.u32 %v557, 16
        %v559 = vadd.s32 %v558, %v556
        %v560 = vsel %vm327, %v404, 2147483647
        %v561 = vand.u32 %v560, 65535
        %v562 = vshra.s32 %v560, 16
        %v563 = vcvt.s32.f32 %v561
        %v564 = vcvt.s32.f32 %v562
        %565 = vmin.xlane.f32.xlu0 %v564
        %v566 = vpop.xlane.xlu0 %565
        %vm567 = vcmp.eq.f32.partialorder %v564, %v566
        %v568 = vsel %vm567, %v563, inf
        %569 = vmin.xlane.f32.xlu0 %v568
        %v570 = vpop.xlane.xlu0 %569
        %v571 = vcvt.f32.s32 %v570
        %v572 = vcvt.f32.s32 %v566
        %v573 = vshll.u32 %v572, 16
        %v574 = vadd.s32 %v573, %v571
        %v575 = vsel %vm327, %v405, 2147483647
        %v576 = vand.u32 %v575, 65535
        %v577 = vshra.s32 %v575, 16
        %v578 = vcvt.s32.f32 %v576
        %v579 = vcvt.s32.f32 %v577
        %580 = vmin.xlane.f32.xlu0 %v579
        %v581 = vpop.xlane.xlu0 %580
        %vm582 = vcmp.eq.f32.partialorder %v579, %v581
        %v583 = vsel %vm582, %v578, inf
        %584 = vmin.xlane.f32.xlu0 %v583
        %v585 = vpop.xlane.xlu0 %584
        %v586 = vcvt.f32.s32 %v585
        %v587 = vcvt.f32.s32 %v581
        %v588 = vshll.u32 %v587, 16
        %v589 = vadd.s32 %v588, %v586
        %v590 = vsel %vm327, %v406, 2147483647
        %v591 = vand.u32 %v590, 65535
        %v592 = vshra.s32 %v590, 16
        %v593 = vcvt.s32.f32 %v591
        %v594 = vcvt.s32.f32 %v592
        %595 = vmin.xlane.f32.xlu0 %v594
        %v596 = vpop.xlane.xlu0 %595
        %vm597 = vcmp.eq.f32.partialorder %v594, %v596
        %v598 = vsel %vm597, %v593, inf
        %599 = vmin.xlane.f32.xlu0 %v598
        %v600 = vpop.xlane.xlu0 %599
        %v601 = vcvt.f32.s32 %v600
        %v602 = vcvt.f32.s32 %v596
        %v603 = vshll.u32 %v602, 16
        %v604 = vadd.s32 %v603, %v601
        %v605 = vsel %vm327, %v407, 2147483647
        %v606 = vand.u32 %v605, 65535
        %v607 = vshra.s32 %v605, 16
        %v608 = vcvt.s32.f32 %v606
        %v609 = vcvt.s32.f32 %v607
        %610 = vmin.xlane.f32.xlu0 %v609
        %v611 = vpop.xlane.xlu0 %610
        %vm612 = vcmp.eq.f32.partialorder %v609, %v611
        %v613 = vsel %vm612, %v608, inf
        %614 = vmin.xlane.f32.xlu0 %v613
        %v615 = vpop.xlane.xlu0 %614
        %v616 = vcvt.f32.s32 %v615
        %v617 = vcvt.f32.s32 %v611
        %v618 = vshll.u32 %v617, 16
        %v619 = vadd.s32 %v618, %v616
        %v620 = vsel %vm327, %v408, 2147483647
        %v621 = vand.u32 %v620, 65535
        %v622 = vshra.s32 %v620, 16
        %v623 = vcvt.s32.f32 %v621
        %v624 = vcvt.s32.f32 %v622
        %625 = vmin.xlane.f32.xlu0 %v624
        %v626 = vpop.xlane.xlu0 %625
        %vm627 = vcmp.eq.f32.partialorder %v624, %v626
        %v628 = vsel %vm627, %v623, inf
        %629 = vmin.xlane.f32.xlu0 %v628
        %v630 = vpop.xlane.xlu0 %629
        %v631 = vcvt.f32.s32 %v630
        %v632 = vcvt.f32.s32 %v626
        %v633 = vshll.u32 %v632, 16
        %v634 = vadd.s32 %v633, %v631
        %v635 = vsel %vm327, %v409, 2147483647
        %v636 = vand.u32 %v635, 65535
        %v637 = vshra.s32 %v635, 16
        %v638 = vcvt.s32.f32 %v636
        %v639 = vcvt.s32.f32 %v637
        %640 = vmin.xlane.f32.xlu0 %v639
        %v641 = vpop.xlane.xlu0 %640
        %vm642 = vcmp.eq.f32.partialorder %v639, %v641
        %v643 = vsel %vm642, %v638, inf
        %644 = vmin.xlane.f32.xlu0 %v643
        %v645 = vpop.xlane.xlu0 %644
        %v646 = vcvt.f32.s32 %v645
        %v647 = vcvt.f32.s32 %v641
        %v648 = vshll.u32 %v647, 16
        %v649 = vadd.s32 %v648, %v646
        %vm650 = vcmp.eq.s32.totalorder %v424, %v311
        %vm651 = vcmp.eq.s32.totalorder %v439, %v312
        %vm652 = vcmp.eq.s32.totalorder %v454, %v313
        %vm653 = vcmp.eq.s32.totalorder %v469, %v314
        %vm654 = vcmp.eq.s32.totalorder %v484, %v315
        %vm655 = vcmp.eq.s32.totalorder %v499, %v316
        %vm656 = vcmp.eq.s32.totalorder %v514, %v317
        %vm657 = vcmp.eq.s32.totalorder %v529, %v318
        %vm658 = vcmp.eq.s32.totalorder %v544, %v319
        %vm659 = vcmp.eq.s32.totalorder %v559, %v320
        %vm660 = vcmp.eq.s32.totalorder %v574, %v321
        %vm661 = vcmp.eq.s32.totalorder %v589, %v322
        %vm662 = vcmp.eq.s32.totalorder %v604, %v323
        %vm663 = vcmp.eq.s32.totalorder %v619, %v324
        %vm664 = vcmp.eq.s32.totalorder %v634, %v325
        %vm665 = vcmp.eq.s32.totalorder %v649, %v326
        %v666 = vsel %vm650, 1, 0
        %v667 = vsel %vm651, 1, 0
        %v668 = vsel %vm652, 1, 0
        %v669 = vsel %vm653, 1, 0
        %v670 = vsel %vm654, 1, 0
        %v671 = vsel %vm655, 1, 0
        %v672 = vsel %vm656, 1, 0
        %v673 = vsel %vm657, 1, 0
        %v674 = vsel %vm658, 1, 0
        %v675 = vsel %vm659, 1, 0
        %v676 = vsel %vm660, 1, 0
        %v677 = vsel %vm661, 1, 0
        %v678 = vsel %vm662, 1, 0
        %v679 = vsel %vm663, 1, 0
        %v680 = vsel %vm664, 1, 0
        %v681 = vsel %vm665, 1, 0
        %v682 = vcvt.s32.f32 %v666
        %v683 = vcvt.s32.f32 %v667
        %v684 = vcvt.s32.f32 %v668
        %v685 = vcvt.s32.f32 %v669
        %v686 = vcvt.s32.f32 %v670
        %v687 = vcvt.s32.f32 %v671
        %v688 = vcvt.s32.f32 %v672
        %v689 = vcvt.s32.f32 %v673
        %v690 = vcvt.s32.f32 %v674
        %v691 = vcvt.s32.f32 %v675
        %v692 = vcvt.s32.f32 %v676
        %v693 = vcvt.s32.f32 %v677
        %v694 = vcvt.s32.f32 %v678
        %v695 = vcvt.s32.f32 %v679
        %v696 = vcvt.s32.f32 %v680
        %v697 = vcvt.s32.f32 %v681
        %v698 = vlaneseq
        %v699 = vshrl.u32 %v698, 7
        %v700 = vadd.s32 %v699, 8
        %v701 = vadd.s32 %v699, 16
        %v702 = vadd.s32 %v699, 24
        %v703 = vadd.s32 %v699, 32
        %v704 = vadd.s32 %v699, 40
        %v705 = vadd.s32 %v699, 48
        %v706 = vadd.s32 %v699, 56
        %v707 = vadd.s32 %v699, 64
        %v708 = vadd.s32 %v699, 72
        %v709 = vadd.s32 %v699, 80
        %v710 = vadd.s32 %v699, 88
        %v711 = vadd.s32 %v699, 96
        %v712 = vadd.s32 %v699, 104
        %v713 = vadd.s32 %v699, 112
        %v714 = vadd.s32 %v699, 120
        %s715 = smul.u32 %s20, 2
        %s716 = sadd.s32 %s715, %s21
        %s717 = smul.u32 %s716, 128
        %v718 = vstv %s717
        %v719 = vadd.s32 %v718, %v699
        %v720 = vadd.s32 %v718, %v700
        %v721 = vadd.s32 %v718, %v701
        %v722 = vadd.s32 %v718, %v702
        %v723 = vadd.s32 %v718, %v703
        %v724 = vadd.s32 %v718, %v704
        %v725 = vadd.s32 %v718, %v705
        %v726 = vadd.s32 %v718, %v706
        %v727 = vadd.s32 %v718, %v707
        %v728 = vadd.s32 %v718, %v708
        %v729 = vadd.s32 %v718, %v709
        %v730 = vadd.s32 %v718, %v710
        %v731 = vadd.s32 %v718, %v711
        %v732 = vadd.s32 %v718, %v712
        %v733 = vadd.s32 %v718, %v713
        %v734 = vadd.s32 %v718, %v714
        %vm735 = vcmp.lt.s32.totalorder %v719, 300
        %vm736 = vcmp.lt.s32.totalorder %v720, 300
        %vm737 = vcmp.lt.s32.totalorder %v721, 300
        %vm738 = vcmp.lt.s32.totalorder %v722, 300
        %vm739 = vcmp.lt.s32.totalorder %v723, 300
        %vm740 = vcmp.lt.s32.totalorder %v724, 300
        %vm741 = vcmp.lt.s32.totalorder %v725, 300
        %vm742 = vcmp.lt.s32.totalorder %v726, 300
        %vm743 = vcmp.lt.s32.totalorder %v727, 300
        %vm744 = vcmp.lt.s32.totalorder %v728, 300
        %vm745 = vcmp.lt.s32.totalorder %v729, 300
        %vm746 = vcmp.lt.s32.totalorder %v730, 300
        %vm747 = vcmp.lt.s32.totalorder %v731, 300
        %vm748 = vcmp.lt.s32.totalorder %v732, 300
        %vm749 = vcmp.lt.s32.totalorder %v733, 300
        %vm750 = vcmp.lt.s32.totalorder %v734, 300
        %v751 = vsel %vm735, %v330, -1.0
        %v752 = vsel %vm736, %v333, -1.0
        %v753 = vsel %vm737, %v336, -1.0
        %v754 = vsel %vm738, %v339, -1.0
        %v755 = vsel %vm739, %v342, -1.0
        %v756 = vsel %vm740, %v345, -1.0
        %v757 = vsel %vm741, %v348, -1.0
        %v758 = vsel %vm742, %v351, -1.0
        %v759 = vsel %vm743, %v354, -1.0
        %v760 = vsel %vm744, %v357, -1.0
        %v761 = vsel %vm745, %v360, -1.0
        %v762 = vsel %vm746, %v363, -1.0
        %v763 = vsel %vm747, %v366, -1.0
        %v764 = vsel %vm748, %v369, -1.0
        %v765 = vsel %vm749, %v372, -1.0
        %v766 = vsel %vm750, %v375, -1.0
        %v767 = vcvt.s32.f32 %v377
        %vm768 = vcmp.lt.s32.totalorder %v377, 10
        %v769 = vrcp.pop 10.0
        %v770 = vmul.f32 %v767, %v769
        %v771 = vsel %vm768, %v770, 2.0
        %v772 = vadd.f32 %v767, 1.0
        %v773 = vmul.f32 %v772, %v769
        %v774 = vsel %vm768, %v773, 3.0
        %vm775 = vcmp.gt.f32.partialorder %v751, %v771
        %vm776 = vcmp.gt.f32.partialorder %v752, %v771
        %vm777 = vcmp.gt.f32.partialorder %v753, %v771
        %vm778 = vcmp.gt.f32.partialorder %v754, %v771
        %vm779 = vcmp.gt.f32.partialorder %v755, %v771
        %vm780 = vcmp.gt.f32.partialorder %v756, %v771
        %vm781 = vcmp.gt.f32.partialorder %v757, %v771
        %vm782 = vcmp.gt.f32.partialorder %v758, %v771
        %vm783 = vcmp.gt.f32.partialorder %v759, %v771
        %vm784 = vcmp.gt.f32.partialorder %v760, %v771
        %vm785 = vcmp.gt.f32.partialorder %v761, %v771
        %vm786 = vcmp.gt.f32.partialorder %v762, %v771
        %vm787 = vcmp.gt.f32.partialorder %v763, %v771
        %vm788 = vcmp.gt.f32.partialorder %v764, %v771
        %vm789 = vcmp.gt.f32.partialorder %v765, %v771
        %vm790 = vcmp.gt.f32.partialorder %v766, %v771
        %vm791 = vcmp.le.f32.partialorder %v751, %v774
        %vm792 = vcmp.le.f32.partialorder %v752, %v774
        %vm793 = vcmp.le.f32.partialorder %v753, %v774
        %vm794 = vcmp.le.f32.partialorder %v754, %v774
        %vm795 = vcmp.le.f32.partialorder %v755, %v774
        %vm796 = vcmp.le.f32.partialorder %v756, %v774
        %vm797 = vcmp.le.f32.partialorder %v757, %v774
        %vm798 = vcmp.le.f32.partialorder %v758, %v774
        %vm799 = vcmp.le.f32.partialorder %v759, %v774
        %vm800 = vcmp.le.f32.partialorder %v760, %v774
        %vm801 = vcmp.le.f32.partialorder %v761, %v774
        %vm802 = vcmp.le.f32.partialorder %v762, %v774
        %vm803 = vcmp.le.f32.partialorder %v763, %v774
        %vm804 = vcmp.le.f32.partialorder %v764, %v774
        %vm805 = vcmp.le.f32.partialorder %v765, %v774
        %vm806 = vcmp.le.f32.partialorder %v766, %v774
        %vm807 = vmand %vm775, %vm791
        %vm808 = vmand %vm776, %vm792
        %vm809 = vmand %vm777, %vm793
        %vm810 = vmand %vm778, %vm794
        %vm811 = vmand %vm779, %vm795
        %vm812 = vmand %vm780, %vm796
        %vm813 = vmand %vm781, %vm797
        %vm814 = vmand %vm782, %vm798
        %vm815 = vmand %vm783, %vm799
        %vm816 = vmand %vm784, %vm800
        %vm817 = vmand %vm785, %vm801
        %vm818 = vmand %vm786, %vm802
        %vm819 = vmand %vm787, %vm803
        %vm820 = vmand %vm788, %vm804
        %vm821 = vmand %vm789, %vm805
        %vm822 = vmand %vm790, %vm806
        %v823 = vsel %vm807, 1, 0
        %v824 = vsel %vm808, 1, 0
        %v825 = vsel %vm809, 1, 0
        %v826 = vsel %vm810, 1, 0
        %v827 = vsel %vm811, 1, 0
        %v828 = vsel %vm812, 1, 0
        %v829 = vsel %vm813, 1, 0
        %v830 = vsel %vm814, 1, 0
        %v831 = vsel %vm815, 1, 0
        %v832 = vsel %vm816, 1, 0
        %v833 = vsel %vm817, 1, 0
        %v834 = vsel %vm818, 1, 0
        %v835 = vsel %vm819, 1, 0
        %v836 = vsel %vm820, 1, 0
        %v837 = vsel %vm821, 1, 0
        %v838 = vsel %vm822, 1, 0
        %v839 = vcvt.s32.f32 %v823
        %v840 = vcvt.s32.f32 %v824
        %v841 = vcvt.s32.f32 %v825
        %v842 = vcvt.s32.f32 %v826
        %v843 = vcvt.s32.f32 %v827
        %v844 = vcvt.s32.f32 %v828
        %v845 = vcvt.s32.f32 %v829
        %v846 = vcvt.s32.f32 %v830
        %v847 = vcvt.s32.f32 %v831
        %v848 = vcvt.s32.f32 %v832
        %v849 = vcvt.s32.f32 %v833
        %v850 = vcvt.s32.f32 %v834
        %v851 = vcvt.s32.f32 %v835
        %v852 = vcvt.s32.f32 %v836
        %v853 = vcvt.s32.f32 %v837
        %v854 = vcvt.s32.f32 %v838
        %vm855 = vcmp.eq.s32.totalorder %v377, 0
        %vm856 = vcmp.eq.s32.totalorder %v377, 1
        %vm857 = vcmp.eq.s32.totalorder %v377, 2
        %859 = vset.pattern.permute.xlu0 0
        %860 = vperm.xlu0 %859, %v682
        %v861 = vpop.permute.xlu0 %860
        %864 = vset.pattern.permute.xlu0 0
        %865 = vperm.xlu0 %864, %v683
        %v866 = vpop.permute.xlu0 %865
        %869 = vset.pattern.permute.xlu0 0
        %870 = vperm.xlu0 %869, %v684
        %v871 = vpop.permute.xlu0 %870
        %874 = vset.pattern.permute.xlu0 0
        %875 = vperm.xlu0 %874, %v685
        %v876 = vpop.permute.xlu0 %875
        %879 = vset.pattern.permute.xlu0 0
        %880 = vperm.xlu0 %879, %v686
        %v881 = vpop.permute.xlu0 %880
        %884 = vset.pattern.permute.xlu0 0
        %885 = vperm.xlu0 %884, %v687
        %v886 = vpop.permute.xlu0 %885
        %889 = vset.pattern.permute.xlu0 0
        %890 = vperm.xlu0 %889, %v688
        %v891 = vpop.permute.xlu0 %890
        %894 = vset.pattern.permute.xlu0 0
        %895 = vperm.xlu0 %894, %v689
        %v896 = vpop.permute.xlu0 %895
        %899 = vset.pattern.permute.xlu0 0
        %900 = vperm.xlu0 %899, %v690
        %v901 = vpop.permute.xlu0 %900
        %904 = vset.pattern.permute.xlu0 0
        %905 = vperm.xlu0 %904, %v691
        %v906 = vpop.permute.xlu0 %905
        %909 = vset.pattern.permute.xlu0 0
        %910 = vperm.xlu0 %909, %v692
        %v911 = vpop.permute.xlu0 %910
        %914 = vset.pattern.permute.xlu0 0
        %915 = vperm.xlu0 %914, %v693
        %v916 = vpop.permute.xlu0 %915
        %919 = vset.pattern.permute.xlu0 0
        %920 = vperm.xlu0 %919, %v694
        %v921 = vpop.permute.xlu0 %920
        %924 = vset.pattern.permute.xlu0 0
        %925 = vperm.xlu0 %924, %v695
        %v926 = vpop.permute.xlu0 %925
        %929 = vset.pattern.permute.xlu0 0
        %930 = vperm.xlu0 %929, %v696
        %v931 = vpop.permute.xlu0 %930
        %934 = vset.pattern.permute.xlu0 0
        %935 = vperm.xlu0 %934, %v697
        %v936 = vpop.permute.xlu0 %935
        %v938 = vsel %vm857, %v861, 0.0
        %v939 = vsel %vm857, %v866, 0.0
        %v940 = vsel %vm857, %v871, 0.0
        %v941 = vsel %vm857, %v876, 0.0
        %v942 = vsel %vm857, %v881, 0.0
        %v943 = vsel %vm857, %v886, 0.0
        %v944 = vsel %vm857, %v891, 0.0
        %v945 = vsel %vm857, %v896, 0.0
        %v946 = vsel %vm857, %v901, 0.0
        %v947 = vsel %vm857, %v906, 0.0
        %v948 = vsel %vm857, %v911, 0.0
        %v949 = vsel %vm857, %v916, 0.0
        %v950 = vsel %vm857, %v921, 0.0
        %v951 = vsel %vm857, %v926, 0.0
        %v952 = vsel %vm857, %v931, 0.0
        %v953 = vsel %vm857, %v936, 0.0
        %v954 = vsel %vm856, %v751, %v938
        %v955 = vsel %vm856, %v752, %v939
        %v956 = vsel %vm856, %v753, %v940
        %v957 = vsel %vm856, %v754, %v941
        %v958 = vsel %vm856, %v755, %v942
        %v959 = vsel %vm856, %v756, %v943
        %v960 = vsel %vm856, %v757, %v944
        %v961 = vsel %vm856, %v758, %v945
        %v962 = vsel %vm856, %v759, %v946
        %v963 = vsel %vm856, %v760, %v947
        %v964 = vsel %vm856, %v761, %v948
        %v965 = vsel %vm856, %v762, %v949
        %v966 = vsel %vm856, %v763, %v950
        %v967 = vsel %vm856, %v764, %v951
        %v968 = vsel %vm856, %v765, %v952
        %v969 = vsel %vm856, %v766, %v953
        %v970 = vsel %vm855, 1.0, %v954
        %v971 = vsel %vm855, 1.0, %v955
        %v972 = vsel %vm855, 1.0, %v956
        %v973 = vsel %vm855, 1.0, %v957
        %v974 = vsel %vm855, 1.0, %v958
        %v975 = vsel %vm855, 1.0, %v959
        %v976 = vsel %vm855, 1.0, %v960
        %v977 = vsel %vm855, 1.0, %v961
        %v978 = vsel %vm855, 1.0, %v962
        %v979 = vsel %vm855, 1.0, %v963
        %v980 = vsel %vm855, 1.0, %v964
        %v981 = vsel %vm855, 1.0, %v965
        %v982 = vsel %vm855, 1.0, %v966
        %v983 = vsel %vm855, 1.0, %v967
        %v984 = vsel %vm855, 1.0, %v968
        %v985 = vsel %vm855, 1.0, %v969
        %986 = vxpose.xlu0.b32.start [1/16] %v970, 128
        %987 = vxpose.xlu0.b32.cont [2/16] %v971, 128
        %988 = vxpose.xlu0.b32.cont [3/16] %v972, 128
        %989 = vxpose.xlu0.b32.cont [4/16] %v973, 128
        %990 = vxpose.xlu0.b32.cont [5/16] %v974, 128
        %991 = vxpose.xlu0.b32.cont [6/16] %v975, 128
        %992 = vxpose.xlu0.b32.cont [7/16] %v976, 128
        %993 = vxpose.xlu0.b32.cont [8/16] %v977, 128
        %994 = vxpose.xlu0.b32.cont [9/16] %v978, 128
        %995 = vxpose.xlu0.b32.cont [10/16] %v979, 128
        %996 = vxpose.xlu0.b32.cont [11/16] %v980, 128
        %997 = vxpose.xlu0.b32.cont [12/16] %v981, 128
        %998 = vxpose.xlu0.b32.cont [13/16] %v982, 128
        %999 = vxpose.xlu0.b32.cont [14/16] %v983, 128
        %1000 = vxpose.xlu0.b32.cont [15/16] %v984, 128
        %1001 = vxpose.xlu0.b32.end [16/16] %v985, 128
        %v1002 = vpop.trf.xlu0
        %v1003 = vpop.trf.xlu0
        %v1004 = vpop.trf.xlu0
        %v1005 = vpop.trf.xlu0
        %v1006 = vpop.trf.xlu0
        %v1007 = vpop.trf.xlu0
        %v1008 = vpop.trf.xlu0
        %v1009 = vpop.trf.xlu0
        %v1010 = vpop.trf.xlu0
        %v1011 = vpop.trf.xlu0
        %v1012 = vpop.trf.xlu0
        %v1013 = vpop.trf.xlu0
        %v1014 = vpop.trf.xlu0
        %v1015 = vpop.trf.xlu0
        %v1016 = vpop.trf.xlu0
        %v1017 = vpop.trf.xlu0
        %1018 = vmatprep.subr.mxu0 0.0
        %v1019 = vand.u32 %v839, 4294901760
        %1020 = vmatpush1.msra.mxu0 %v1019
        %1021 = vmatprep.subr.mxu0 0.0
        %v1022 = vand.u32 %v840, 4294901760
        %1023 = vmatpush1.msra.mxu0 %v1022
        %1024 = vmatprep.subr.mxu0 0.0
        %v1025 = vand.u32 %v841, 4294901760
        %1026 = vmatpush1.msra.mxu0 %v1025
        %1027 = vmatprep.subr.mxu0 0.0
        %v1028 = vand.u32 %v842, 4294901760
        %1029 = vmatpush1.msra.mxu0 %v1028
        %1030 = vmatprep.subr.mxu0 0.0
        %v1031 = vand.u32 %v843, 4294901760
        %1032 = vmatpush1.msra.mxu0 %v1031
        %1033 = vmatprep.subr.mxu0 0.0
        %v1034 = vand.u32 %v844, 4294901760
        %1035 = vmatpush1.msra.mxu0 %v1034
        %1036 = vmatprep.subr.mxu0 0.0
        %v1037 = vand.u32 %v845, 4294901760
        %1038 = vmatpush1.msra.mxu0 %v1037
        %1039 = vmatprep.subr.mxu0 0.0
        %v1040 = vand.u32 %v846, 4294901760
        %1041 = vmatpush1.msra.mxu0 %v1040
        %1042 = vmatprep.subr.mxu0 0.0
        %v1043 = vand.u32 %v847, 4294901760
        %1044 = vmatpush1.msra.mxu0 %v1043
        %1045 = vmatprep.subr.mxu0 0.0
        %v1046 = vand.u32 %v848, 4294901760
        %1047 = vmatpush1.msra.mxu0 %v1046
        %1048 = vmatprep.subr.mxu0 0.0
        %v1049 = vand.u32 %v849, 4294901760
        %1050 = vmatpush1.msra.mxu0 %v1049
        %1051 = vmatprep.subr.mxu0 0.0
        %v1052 = vand.u32 %v850, 4294901760
        %1053 = vmatpush1.msra.mxu0 %v1052
        %1054 = vmatprep.subr.mxu0 0.0
        %v1055 = vand.u32 %v851, 4294901760
        %1056 = vmatpush1.msra.mxu0 %v1055
        %1057 = vmatprep.subr.mxu0 0.0
        %v1058 = vand.u32 %v852, 4294901760
        %1059 = vmatpush1.msra.mxu0 %v1058
        %1060 = vmatprep.subr.mxu0 0.0
        %v1061 = vand.u32 %v853, 4294901760
        %1062 = vmatpush1.msra.mxu0 %v1061
        %1063 = vmatprep.subr.mxu0 0.0
        %v1064 = vand.u32 %v854, 4294901760
        %1065 = vmatpush1.msra.mxu0 %v1064
        %1066 = vmatprep.subr.mxu0 0.0
        %1067 = vmatpush1.msra.mxu0 0.0
        %1068 = vmatprep.subr.mxu0 0.0
        %1069 = vmatpush1.msra.mxu0 0.0
        %1070 = vmatprep.subr.mxu0 0.0
        %1071 = vmatpush1.msra.mxu0 0.0
        %1072 = vmatprep.subr.mxu0 0.0
        %1073 = vmatpush1.msra.mxu0 0.0
        %1074 = vmatprep.subr.mxu0 0.0
        %1075 = vmatpush1.msra.mxu0 0.0
        %1076 = vmatprep.subr.mxu0 0.0
        %1077 = vmatpush1.msra.mxu0 0.0
        %1078 = vmatprep.subr.mxu0 0.0
        %1079 = vmatpush1.msra.mxu0 0.0
        %1080 = vmatprep.subr.mxu0 0.0
        %1081 = vmatpush1.msra.mxu0 0.0
        %1082 = vmatprep.subr.mxu0 0.0
        %1083 = vmatpush1.msra.mxu0 0.0
        %1084 = vmatprep.subr.mxu0 0.0
        %1085 = vmatpush1.msra.mxu0 0.0
        %1086 = vmatprep.subr.mxu0 0.0
        %1087 = vmatpush1.msra.mxu0 0.0
        %1088 = vmatprep.subr.mxu0 0.0
        %1089 = vmatpush1.msra.mxu0 0.0
        %1090 = vmatprep.subr.mxu0 0.0
        %1091 = vmatpush1.msra.mxu0 0.0
        %1092 = vmatprep.subr.mxu0 0.0
        %1093 = vmatpush1.msra.mxu0 0.0
        %1094 = vmatprep.subr.mxu0 0.0
        %1095 = vmatpush1.msra.mxu0 0.0
        %1096 = vmatprep.subr.mxu0 0.0
        %1097 = vmatpush1.msra.mxu0 0.0
        %1098 = vmatprep.mubr.f32.mxu0 0.0
        %v1099 = vand.u32 %v1002, 4294901760
        %v1100 = vsub.f32 %v1002, %v1099
        %v1101 = vand.u32 %v1100, 4294901760
        %v1102 = vsub.f32 %v1100, %v1101
        %v1103 = vand.u32 %v1102, 4294901760
        %1104 = vmatmul.mubr.f32.gmra.mrb[0].mxu0 %v1103
        %v1105 = vpop.f32.mrb[0].mxu0
        %v1106 = vadd.f32 0.0, %v1105
        %v1107 = vpop.f32.mrb[0].mxu0
        %1108 = vdwg.mxu0
        %1109 = vmatprep.subr.mxu0 0.0
        %v1110 = vand.u32 %v839, 4294901760
        %v1111 = vsub.f32 %v839, %v1110
        %v1112 = vand.u32 %v1111, 4294901760
        %v1113 = vsub.f32 %v1111, %v1112
        %v1114 = vand.u32 %v1113, 4294901760
        %1115 = vmatpush1.msra.mxu0 %v1114
        %1116 = vmatprep.subr.mxu0 0.0
        %v1117 = vand.u32 %v840, 4294901760
        %v1118 = vsub.f32 %v840, %v1117
        %v1119 = vand.u32 %v1118, 4294901760
        %v1120 = vsub.f32 %v1118, %v1119
        %v1121 = vand.u32 %v1120, 4294901760
        %1122 = vmatpush1.msra.mxu0 %v1121
        %1123 = vmatprep.subr.mxu0 0.0
        %v1124 = vand.u32 %v841, 4294901760
        %v1125 = vsub.f32 %v841, %v1124
        %v1126 = vand.u32 %v1125, 4294901760
        %v1127 = vsub.f32 %v1125, %v1126
        %v1128 = vand.u32 %v1127, 4294901760
        %1129 = vmatpush1.msra.mxu0 %v1128
        %1130 = vmatprep.subr.mxu0 0.0
        %v1131 = vand.u32 %v842, 4294901760
        %v1132 = vsub.f32 %v842, %v1131
        %v1133 = vand.u32 %v1132, 4294901760
        %v1134 = vsub.f32 %v1132, %v1133
        %v1135 = vand.u32 %v1134, 4294901760
        %1136 = vmatpush1.msra.mxu0 %v1135
        %1137 = vmatprep.subr.mxu0 0.0
        %v1138 = vand.u32 %v843, 4294901760
        %v1139 = vsub.f32 %v843, %v1138
        %v1140 = vand.u32 %v1139, 4294901760
        %v1141 = vsub.f32 %v1139, %v1140
        %v1142 = vand.u32 %v1141, 4294901760
        %1143 = vmatpush1.msra.mxu0 %v1142
        %1144 = vmatprep.subr.mxu0 0.0
        %v1145 = vand.u32 %v844, 4294901760
        %v1146 = vsub.f32 %v844, %v1145
        %v1147 = vand.u32 %v1146, 4294901760
        %v1148 = vsub.f32 %v1146, %v1147
        %v1149 = vand.u32 %v1148, 4294901760
        %1150 = vmatpush1.msra.mxu0 %v1149
        %1151 = vmatprep.subr.mxu0 0.0
        %v1152 = vand.u32 %v845, 4294901760
        %v1153 = vsub.f32 %v845, %v1152
        %v1154 = vand.u32 %v1153, 4294901760
        %v1155 = vsub.f32 %v1153, %v1154
        %v1156 = vand.u32 %v1155, 4294901760
        %1157 = vmatpush1.msra.mxu0 %v1156
        %1158 = vmatprep.subr.mxu0 0.0
        %v1159 = vand.u32 %v846, 4294901760
        %v1160 = vsub.f32 %v846, %v1159
        %v1161 = vand.u32 %v1160, 4294901760
        %v1162 = vsub.f32 %v1160, %v1161
        %v1163 = vand.u32 %v1162, 4294901760
        %1164 = vmatpush1.msra.mxu0 %v1163
        %1165 = vmatprep.subr.mxu0 0.0
        %v1166 = vand.u32 %v847, 4294901760
        %v1167 = vsub.f32 %v847, %v1166
        %v1168 = vand.u32 %v1167, 4294901760
        %v1169 = vsub.f32 %v1167, %v1168
        %v1170 = vand.u32 %v1169, 4294901760
        %1171 = vmatpush1.msra.mxu0 %v1170
        %1172 = vmatprep.subr.mxu0 0.0
        %v1173 = vand.u32 %v848, 4294901760
        %v1174 = vsub.f32 %v848, %v1173
        %v1175 = vand.u32 %v1174, 4294901760
        %v1176 = vsub.f32 %v1174, %v1175
        %v1177 = vand.u32 %v1176, 4294901760
        %1178 = vmatpush1.msra.mxu0 %v1177
        %1179 = vmatprep.subr.mxu0 0.0
        %v1180 = vand.u32 %v849, 4294901760
        %v1181 = vsub.f32 %v849, %v1180
        %v1182 = vand.u32 %v1181, 4294901760
        %v1183 = vsub.f32 %v1181, %v1182
        %v1184 = vand.u32 %v1183, 4294901760
        %1185 = vmatpush1.msra.mxu0 %v1184
        %1186 = vmatprep.subr.mxu0 0.0
        %v1187 = vand.u32 %v850, 4294901760
        %v1188 = vsub.f32 %v850, %v1187
        %v1189 = vand.u32 %v1188, 4294901760
        %v1190 = vsub.f32 %v1188, %v1189
        %v1191 = vand.u32 %v1190, 4294901760
        %1192 = vmatpush1.msra.mxu0 %v1191
        %1193 = vmatprep.subr.mxu0 0.0
        %v1194 = vand.u32 %v851, 4294901760
        %v1195 = vsub.f32 %v851, %v1194
        %v1196 = vand.u32 %v1195, 4294901760
        %v1197 = vsub.f32 %v1195, %v1196
        %v1198 = vand.u32 %v1197, 4294901760
        %1199 = vmatpush1.msra.mxu0 %v1198
        %1200 = vmatprep.subr.mxu0 0.0
        %v1201 = vand.u32 %v852, 4294901760
        %v1202 = vsub.f32 %v852, %v1201
        %v1203 = vand.u32 %v1202, 4294901760
        %v1204 = vsub.f32 %v1202, %v1203
        %v1205 = vand.u32 %v1204, 4294901760
        %1206 = vmatpush1.msra.mxu0 %v1205
        %1207 = vmatprep.subr.mxu0 0.0
        %v1208 = vand.u32 %v853, 4294901760
        %v1209 = vsub.f32 %v853, %v1208
        %v1210 = vand.u32 %v1209, 4294901760
        %v1211 = vsub.f32 %v1209, %v1210
        %v1212 = vand.u32 %v1211, 4294901760
        %1213 = vmatpush1.msra.mxu0 %v1212
        %1214 = vmatprep.subr.mxu0 0.0
        %v1215 = vand.u32 %v854, 4294901760
        %v1216 = vsub.f32 %v854, %v1215
        %v1217 = vand.u32 %v1216, 4294901760
        %v1218 = vsub.f32 %v1216, %v1217
        %v1219 = vand.u32 %v1218, 4294901760
        %1220 = vmatpush1.msra.mxu0 %v1219
        %1221 = vmatprep.subr.mxu0 0.0
        %1222 = vmatpush1.msra.mxu0 0.0
        %1223 = vmatprep.subr.mxu0 0.0
        %1224 = vmatpush1.msra.mxu0 0.0
        %1225 = vmatprep.subr.mxu0 0.0
        %1226 = vmatpush1.msra.mxu0 0.0
        %1227 = vmatprep.subr.mxu0 0.0
        %1228 = vmatpush1.msra.mxu0 0.0
        %1229 = vmatprep.subr.mxu0 0.0
        %1230 = vmatpush1.msra.mxu0 0.0
        %1231 = vmatprep.subr.mxu0 0.0
        %1232 = vmatpush1.msra.mxu0 0.0
        %1233 = vmatprep.subr.mxu0 0.0
        %1234 = vmatpush1.msra.mxu0 0.0
        %1235 = vmatprep.subr.mxu0 0.0
        %1236 = vmatpush1.msra.mxu0 0.0
        %1237 = vmatprep.subr.mxu0 0.0
        %1238 = vmatpush1.msra.mxu0 0.0
        %1239 = vmatprep.subr.mxu0 0.0
        %1240 = vmatpush1.msra.mxu0 0.0
        %1241 = vmatprep.subr.mxu0 0.0
        %1242 = vmatpush1.msra.mxu0 0.0
        %1243 = vmatprep.subr.mxu0 0.0
        %1244 = vmatpush1.msra.mxu0 0.0
        %1245 = vmatprep.subr.mxu0 0.0
        %1246 = vmatpush1.msra.mxu0 0.0
        %1247 = vmatprep.subr.mxu0 0.0
        %1248 = vmatpush1.msra.mxu0 0.0
        %1249 = vmatprep.subr.mxu0 0.0
        %1250 = vmatpush1.msra.mxu0 0.0
        %1251 = vmatprep.subr.mxu0 0.0
        %1252 = vmatpush1.msra.mxu0 0.0
        %1253 = vmatprep.mubr.f32.mxu0 0.0
        %v1254 = vand.u32 %v1002, 4294901760
        %1255 = vmatmul.mubr.f32.gmra.mrb[0].mxu0 %v1254
        %v1256 = vpop.f32.mrb[0].mxu0
        %v1257 = vadd.f32 %v1106, %v1256
        %v1258 = vpop.f32.mrb[0].mxu0
        %1259 = vdwg.mxu0
        %1260 = vmatprep.subr.mxu0 0.0
        %v1261 = vand.u32 %v839, 4294901760
        %v1262 = vsub.f32 %v839, %v1261
        %1263 = vmatpush1.msra.mxu0 %v1262
        %1264 = vmatprep.subr.mxu0 0.0
        %v1265 = vand.u32 %v840, 4294901760
        %v1266 = vsub.f32 %v840, %v1265
        %1267 = vmatpush1.msra.mxu0 %v1266
        %1268 = vmatprep.subr.mxu0 0.0
        %v1269 = vand.u32 %v841, 4294901760
        %v1270 = vsub.f32 %v841, %v1269
        %1271 = vmatpush1.msra.mxu0 %v1270
        %1272 = vmatprep.subr.mxu0 0.0
        %v1273 = vand.u32 %v842, 4294901760
        %v1274 = vsub.f32 %v842, %v1273
        %1275 = vmatpush1.msra.mxu0 %v1274
        %1276 = vmatprep.subr.mxu0 0.0
        %v1277 = vand.u32 %v843, 4294901760
        %v1278 = vsub.f32 %v843, %v1277
        %1279 = vmatpush1.msra.mxu0 %v1278
        %1280 = vmatprep.subr.mxu0 0.0
        %v1281 = vand.u32 %v844, 4294901760
        %v1282 = vsub.f32 %v844, %v1281
        %1283 = vmatpush1.msra.mxu0 %v1282
        %1284 = vmatprep.subr.mxu0 0.0
        %v1285 = vand.u32 %v845, 4294901760
        %v1286 = vsub.f32 %v845, %v1285
        %1287 = vmatpush1.msra.mxu0 %v1286
        %1288 = vmatprep.subr.mxu0 0.0
        %v1289 = vand.u32 %v846, 4294901760
        %v1290 = vsub.f32 %v846, %v1289
        %1291 = vmatpush1.msra.mxu0 %v1290
        %1292 = vmatprep.subr.mxu0 0.0
        %v1293 = vand.u32 %v847, 4294901760
        %v1294 = vsub.f32 %v847, %v1293
        %1295 = vmatpush1.msra.mxu0 %v1294
        %1296 = vmatprep.subr.mxu0 0.0
        %v1297 = vand.u32 %v848, 4294901760
        %v1298 = vsub.f32 %v848, %v1297
        %1299 = vmatpush1.msra.mxu0 %v1298
        %1300 = vmatprep.subr.mxu0 0.0
        %v1301 = vand.u32 %v849, 4294901760
        %v1302 = vsub.f32 %v849, %v1301
        %1303 = vmatpush1.msra.mxu0 %v1302
        %1304 = vmatprep.subr.mxu0 0.0
        %v1305 = vand.u32 %v850, 4294901760
        %v1306 = vsub.f32 %v850, %v1305
        %1307 = vmatpush1.msra.mxu0 %v1306
        %1308 = vmatprep.subr.mxu0 0.0
        %v1309 = vand.u32 %v851, 4294901760
        %v1310 = vsub.f32 %v851, %v1309
        %1311 = vmatpush1.msra.mxu0 %v1310
        %1312 = vmatprep.subr.mxu0 0.0
        %v1313 = vand.u32 %v852, 4294901760
        %v1314 = vsub.f32 %v852, %v1313
        %1315 = vmatpush1.msra.mxu0 %v1314
        %1316 = vmatprep.subr.mxu0 0.0
        %v1317 = vand.u32 %v853, 4294901760
        %v1318 = vsub.f32 %v853, %v1317
        %1319 = vmatpush1.msra.mxu0 %v1318
        %1320 = vmatprep.subr.mxu0 0.0
        %v1321 = vand.u32 %v854, 4294901760
        %v1322 = vsub.f32 %v854, %v1321
        %1323 = vmatpush1.msra.mxu0 %v1322
        %1324 = vmatprep.subr.mxu0 0.0
        %1325 = vmatpush1.msra.mxu0 0.0
        %1326 = vmatprep.subr.mxu0 0.0
        %1327 = vmatpush1.msra.mxu0 0.0
        %1328 = vmatprep.subr.mxu0 0.0
        %1329 = vmatpush1.msra.mxu0 0.0
        %1330 = vmatprep.subr.mxu0 0.0
        %1331 = vmatpush1.msra.mxu0 0.0
        %1332 = vmatprep.subr.mxu0 0.0
        %1333 = vmatpush1.msra.mxu0 0.0
        %1334 = vmatprep.subr.mxu0 0.0
        %1335 = vmatpush1.msra.mxu0 0.0
        %1336 = vmatprep.subr.mxu0 0.0
        %1337 = vmatpush1.msra.mxu0 0.0
        %1338 = vmatprep.subr.mxu0 0.0
        %1339 = vmatpush1.msra.mxu0 0.0
        %1340 = vmatprep.subr.mxu0 0.0
        %1341 = vmatpush1.msra.mxu0 0.0
        %1342 = vmatprep.subr.mxu0 0.0
        %1343 = vmatpush1.msra.mxu0 0.0
        %1344 = vmatprep.subr.mxu0 0.0
        %1345 = vmatpush1.msra.mxu0 0.0
        %1346 = vmatprep.subr.mxu0 0.0
        %1347 = vmatpush1.msra.mxu0 0.0
        %1348 = vmatprep.subr.mxu0 0.0
        %1349 = vmatpush1.msra.mxu0 0.0
        %1350 = vmatprep.subr.mxu0 0.0
        %1351 = vmatpush1.msra.mxu0 0.0
        %1352 = vmatprep.subr.mxu0 0.0
        %1353 = vmatpush1.msra.mxu0 0.0
        %1354 = vmatprep.subr.mxu0 0.0
        %1355 = vmatpush1.msra.mxu0 0.0
        %1356 = vmatprep.mubr.f32.mxu0 0.0
        %v1357 = vand.u32 %v1002, 4294901760
        %v1358 = vsub.f32 %v1002, %v1357
        %1359 = vmatmul.mubr.f32.gmra.mrb[0].mxu0 %v1358
        %v1360 = vpop.f32.mrb[0].mxu0
        %v1361 = vadd.f32 %v1257, %v1360
        %v1362 = vpop.f32.mrb[0].mxu0
        %1363 = vdwg.mxu0
        %1364 = vmatprep.subr.mxu0 0.0
        %v1365 = vand.u32 %v839, 4294901760
        %1366 = vmatpush1.msra.mxu0 %v1365
        %1367 = vmatprep.subr.mxu0 0.0
        %v1368 = vand.u32 %v840, 4294901760
        %1369 = vmatpush1.msra.mxu0 %v1368
        %1370 = vmatprep.subr.mxu0 0.0
        %v1371 = vand.u32 %v841, 4294901760
        %1372 = vmatpush1.msra.mxu0 %v1371
        %1373 = vmatprep.subr.mxu0 0.0
        %v1374 = vand.u32 %v842, 4294901760
        %1375 = vmatpush1.msra.mxu0 %v1374
        %1376 = vmatprep.subr.mxu0 0.0
        %v1377 = vand.u32 %v843, 4294901760
        %1378 = vmatpush1.msra.mxu0 %v1377
        %1379 = vmatprep.subr.mxu0 0.0
        %v1380 = vand.u32 %v844, 4294901760
        %1381 = vmatpush1.msra.mxu0 %v1380
        %1382 = vmatprep.subr.mxu0 0.0
        %v1383 = vand.u32 %v845, 4294901760
        %1384 = vmatpush1.msra.mxu0 %v1383
        %1385 = vmatprep.subr.mxu0 0.0
        %v1386 = vand.u32 %v846, 4294901760
        %1387 = vmatpush1.msra.mxu0 %v1386
        %1388 = vmatprep.subr.mxu0 0.0
        %v1389 = vand.u32 %v847, 4294901760
        %1390 = vmatpush1.msra.mxu0 %v1389
        %1391 = vmatprep.subr.mxu0 0.0
        %v1392 = vand.u32 %v848, 4294901760
        %1393 = vmatpush1.msra.mxu0 %v1392
        %1394 = vmatprep.subr.mxu0 0.0
        %v1395 = vand.u32 %v849, 4294901760
        %1396 = vmatpush1.msra.mxu0 %v1395
        %1397 = vmatprep.subr.mxu0 0.0
        %v1398 = vand.u32 %v850, 4294901760
        %1399 = vmatpush1.msra.mxu0 %v1398
        %1400 = vmatprep.subr.mxu0 0.0
        %v1401 = vand.u32 %v851, 4294901760
        %1402 = vmatpush1.msra.mxu0 %v1401
        %1403 = vmatprep.subr.mxu0 0.0
        %v1404 = vand.u32 %v852, 4294901760
        %1405 = vmatpush1.msra.mxu0 %v1404
        %1406 = vmatprep.subr.mxu0 0.0
        %v1407 = vand.u32 %v853, 4294901760
        %1408 = vmatpush1.msra.mxu0 %v1407
        %1409 = vmatprep.subr.mxu0 0.0
        %v1410 = vand.u32 %v854, 4294901760
        %1411 = vmatpush1.msra.mxu0 %v1410
        %1412 = vmatprep.subr.mxu0 0.0
        %1413 = vmatpush1.msra.mxu0 0.0
        %1414 = vmatprep.subr.mxu0 0.0
        %1415 = vmatpush1.msra.mxu0 0.0
        %1416 = vmatprep.subr.mxu0 0.0
        %1417 = vmatpush1.msra.mxu0 0.0
        %1418 = vmatprep.subr.mxu0 0.0
        %1419 = vmatpush1.msra.mxu0 0.0
        %1420 = vmatprep.subr.mxu0 0.0
        %1421 = vmatpush1.msra.mxu0 0.0
        %1422 = vmatprep.subr.mxu0 0.0
        %1423 = vmatpush1.msra.mxu0 0.0
        %1424 = vmatprep.subr.mxu0 0.0
        %1425 = vmatpush1.msra.mxu0 0.0
        %1426 = vmatprep.subr.mxu0 0.0
        %1427 = vmatpush1.msra.mxu0 0.0
        %1428 = vmatprep.subr.mxu0 0.0
        %1429 = vmatpush1.msra.mxu0 0.0
        %1430 = vmatprep.subr.mxu0 0.0
        %1431 = vmatpush1.msra.mxu0 0.0
        %1432 = vmatprep.subr.mxu0 0.0
        %1433 = vmatpush1.msra.mxu0 0.0
        %1434 = vmatprep.subr.mxu0 0.0
        %1435 = vmatpush1.msra.mxu0 0.0
        %1436 = vmatprep.subr.mxu0 0.0
        %1437 = vmatpush1.msra.mxu0 0.0
        %1438 = vmatprep.subr.mxu0 0.0
        %1439 = vmatpush1.msra.mxu0 0.0
        %1440 = vmatprep.subr.mxu0 0.0
        %1441 = vmatpush1.msra.mxu0 0.0
        %1442 = vmatprep.subr.mxu0 0.0
        %1443 = vmatpush1.msra.mxu0 0.0
        %1444 = vmatprep.mubr.f32.mxu0 0.0
        %v1445 = vand.u32 %v1002, 4294901760
        %v1446 = vsub.f32 %v1002, %v1445
        %v1447 = vand.u32 %v1446, 4294901760
        %1448 = vmatmul.mubr.f32.gmra.mrb[0].mxu0 %v1447
        %v1449 = vpop.f32.mrb[0].mxu0
        %v1450 = vadd.f32 %v1361, %v1449
        %v1451 = vpop.f32.mrb[0].mxu0
        %1452 = vdwg.mxu0
        %1453 = vmatprep.subr.mxu0 0.0
        %v1454 = vand.u32 %v839, 4294901760
        %v1455 = vsub.f32 %v839, %v1454
        %v1456 = vand.u32 %v1455, 4294901760
        %1457 = vmatpush1.msra.mxu0 %v1456
        %1458 = vmatprep.subr.mxu0 0.0
        %v1459 = vand.u32 %v840, 4294901760
        %v1460 = vsub.f32 %v840, %v1459
        %v1461 = vand.u32 %v1460, 4294901760
        %1462 = vmatpush1.msra.mxu0 %v1461
        %1463 = vmatprep.subr.mxu0 0.0
        %v1464 = vand.u32 %v841, 4294901760
        %v1465 = vsub.f32 %v841, %v1464
        %v1466 = vand.u32 %v1465, 4294901760
        %1467 = vmatpush1.msra.mxu0 %v1466
        %1468 = vmatprep.subr.mxu0 0.0
        %v1469 = vand.u32 %v842, 4294901760
        %v1470 = vsub.f32 %v842, %v1469
        %v1471 = vand.u32 %v1470, 4294901760
        %1472 = vmatpush1.msra.mxu0 %v1471
        %1473 = vmatprep.subr.mxu0 0.0
        %v1474 = vand.u32 %v843, 4294901760
        %v1475 = vsub.f32 %v843, %v1474
        %v1476 = vand.u32 %v1475, 4294901760
        %1477 = vmatpush1.msra.mxu0 %v1476
        %1478 = vmatprep.subr.mxu0 0.0
        %v1479 = vand.u32 %v844, 4294901760
        %v1480 = vsub.f32 %v844, %v1479
        %v1481 = vand.u32 %v1480, 4294901760
        %1482 = vmatpush1.msra.mxu0 %v1481
        %1483 = vmatprep.subr.mxu0 0.0
        %v1484 = vand.u32 %v845, 4294901760
        %v1485 = vsub.f32 %v845, %v1484
        %v1486 = vand.u32 %v1485, 4294901760
        %1487 = vmatpush1.msra.mxu0 %v1486
        %1488 = vmatprep.subr.mxu0 0.0
        %v1489 = vand.u32 %v846, 4294901760
        %v1490 = vsub.f32 %v846, %v1489
        %v1491 = vand.u32 %v1490, 4294901760
        %1492 = vmatpush1.msra.mxu0 %v1491
        %1493 = vmatprep.subr.mxu0 0.0
        %v1494 = vand.u32 %v847, 4294901760
        %v1495 = vsub.f32 %v847, %v1494
        %v1496 = vand.u32 %v1495, 4294901760
        %1497 = vmatpush1.msra.mxu0 %v1496
        %1498 = vmatprep.subr.mxu0 0.0
        %v1499 = vand.u32 %v848, 4294901760
        %v1500 = vsub.f32 %v848, %v1499
        %v1501 = vand.u32 %v1500, 4294901760
        %1502 = vmatpush1.msra.mxu0 %v1501
        %1503 = vmatprep.subr.mxu0 0.0
        %v1504 = vand.u32 %v849, 4294901760
        %v1505 = vsub.f32 %v849, %v1504
        %v1506 = vand.u32 %v1505, 4294901760
        %1507 = vmatpush1.msra.mxu0 %v1506
        %1508 = vmatprep.subr.mxu0 0.0
        %v1509 = vand.u32 %v850, 4294901760
        %v1510 = vsub.f32 %v850, %v1509
        %v1511 = vand.u32 %v1510, 4294901760
        %1512 = vmatpush1.msra.mxu0 %v1511
        %1513 = vmatprep.subr.mxu0 0.0
        %v1514 = vand.u32 %v851, 4294901760
        %v1515 = vsub.f32 %v851, %v1514
        %v1516 = vand.u32 %v1515, 4294901760
        %1517 = vmatpush1.msra.mxu0 %v1516
        %1518 = vmatprep.subr.mxu0 0.0
        %v1519 = vand.u32 %v852, 4294901760
        %v1520 = vsub.f32 %v852, %v1519
        %v1521 = vand.u32 %v1520, 4294901760
        %1522 = vmatpush1.msra.mxu0 %v1521
        %1523 = vmatprep.subr.mxu0 0.0
        %v1524 = vand.u32 %v853, 4294901760
        %v1525 = vsub.f32 %v853, %v1524
        %v1526 = vand.u32 %v1525, 4294901760
        %1527 = vmatpush1.msra.mxu0 %v1526
        %1528 = vmatprep.subr.mxu0 0.0
        %v1529 = vand.u32 %v854, 4294901760
        %v1530 = vsub.f32 %v854, %v1529
        %v1531 = vand.u32 %v1530, 4294901760
        %1532 = vmatpush1.msra.mxu0 %v1531
        %1533 = vmatprep.subr.mxu0 0.0
        %1534 = vmatpush1.msra.mxu0 0.0
        %1535 = vmatprep.subr.mxu0 0.0
        %1536 = vmatpush1.msra.mxu0 0.0
        %1537 = vmatprep.subr.mxu0 0.0
        %1538 = vmatpush1.msra.mxu0 0.0
        %1539 = vmatprep.subr.mxu0 0.0
        %1540 = vmatpush1.msra.mxu0 0.0
        %1541 = vmatprep.subr.mxu0 0.0
        %1542 = vmatpush1.msra.mxu0 0.0
        %1543 = vmatprep.subr.mxu0 0.0
        %1544 = vmatpush1.msra.mxu0 0.0
        %1545 = vmatprep.subr.mxu0 0.0
        %1546 = vmatpush1.msra.mxu0 0.0
        %1547 = vmatprep.subr.mxu0 0.0
        %1548 = vmatpush1.msra.mxu0 0.0
        %1549 = vmatprep.subr.mxu0 0.0
        %1550 = vmatpush1.msra.mxu0 0.0
        %1551 = vmatprep.subr.mxu0 0.0
        %1552 = vmatpush1.msra.mxu0 0.0
        %1553 = vmatprep.subr.mxu0 0.0
        %1554 = vmatpush1.msra.mxu0 0.0
        %1555 = vmatprep.subr.mxu0 0.0
        %1556 = vmatpush1.msra.mxu0 0.0
        %1557 = vmatprep.subr.mxu0 0.0
        %1558 = vmatpush1.msra.mxu0 0.0
        %1559 = vmatprep.subr.mxu0 0.0
        %1560 = vmatpush1.msra.mxu0 0.0
        %1561 = vmatprep.subr.mxu0 0.0
        %1562 = vmatpush1.msra.mxu0 0.0
        %1563 = vmatprep.subr.mxu0 0.0
        %1564 = vmatpush1.msra.mxu0 0.0
        %1565 = vmatprep.mubr.f32.mxu0 0.0
        %v1566 = vand.u32 %v1002, 4294901760
        %1567 = vmatmul.mubr.f32.gmra.mrb[0].mxu0 %v1566
        %v1568 = vpop.f32.mrb[0].mxu0
        %v1569 = vadd.f32 %v1450, %v1568
        %v1570 = vpop.f32.mrb[0].mxu0
        %1571 = vdwg.mxu0
        %1572 = vmatprep.subr.mxu0 0.0
        %v1573 = vand.u32 %v839, 4294901760
        %1574 = vmatpush1.msra.mxu0 %v1573
        %1575 = vmatprep.subr.mxu0 0.0
        %v1576 = vand.u32 %v840, 4294901760
        %1577 = vmatpush1.msra.mxu0 %v1576
        %1578 = vmatprep.subr.mxu0 0.0
        %v1579 = vand.u32 %v841, 4294901760
        %1580 = vmatpush1.msra.mxu0 %v1579
        %1581 = vmatprep.subr.mxu0 0.0
        %v1582 = vand.u32 %v842, 4294901760
        %1583 = vmatpush1.msra.mxu0 %v1582
        %1584 = vmatprep.subr.mxu0 0.0
        %v1585 = vand.u32 %v843, 4294901760
        %1586 = vmatpush1.msra.mxu0 %v1585
        %1587 = vmatprep.subr.mxu0 0.0
        %v1588 = vand.u32 %v844, 4294901760
        %1589 = vmatpush1.msra.mxu0 %v1588
        %1590 = vmatprep.subr.mxu0 0.0
        %v1591 = vand.u32 %v845, 4294901760
        %1592 = vmatpush1.msra.mxu0 %v1591
        %1593 = vmatprep.subr.mxu0 0.0
        %v1594 = vand.u32 %v846, 4294901760
        %1595 = vmatpush1.msra.mxu0 %v1594
        %1596 = vmatprep.subr.mxu0 0.0
        %v1597 = vand.u32 %v847, 4294901760
        %1598 = vmatpush1.msra.mxu0 %v1597
        %1599 = vmatprep.subr.mxu0 0.0
        %v1600 = vand.u32 %v848, 4294901760
        %1601 = vmatpush1.msra.mxu0 %v1600
        %1602 = vmatprep.subr.mxu0 0.0
        %v1603 = vand.u32 %v849, 4294901760
        %1604 = vmatpush1.msra.mxu0 %v1603
        %1605 = vmatprep.subr.mxu0 0.0
        %v1606 = vand.u32 %v850, 4294901760
        %1607 = vmatpush1.msra.mxu0 %v1606
        %1608 = vmatprep.subr.mxu0 0.0
        %v1609 = vand.u32 %v851, 4294901760
        %1610 = vmatpush1.msra.mxu0 %v1609
        %1611 = vmatprep.subr.mxu0 0.0
        %v1612 = vand.u32 %v852, 4294901760
        %1613 = vmatpush1.msra.mxu0 %v1612
        %1614 = vmatprep.subr.mxu0 0.0
        %v1615 = vand.u32 %v853, 4294901760
        %1616 = vmatpush1.msra.mxu0 %v1615
        %1617 = vmatprep.subr.mxu0 0.0
        %v1618 = vand.u32 %v854, 4294901760
        %1619 = vmatpush1.msra.mxu0 %v1618
        %1620 = vmatprep.subr.mxu0 0.0
        %1621 = vmatpush1.msra.mxu0 0.0
        %1622 = vmatprep.subr.mxu0 0.0
        %1623 = vmatpush1.msra.mxu0 0.0
        %1624 = vmatprep.subr.mxu0 0.0
        %1625 = vmatpush1.msra.mxu0 0.0
        %1626 = vmatprep.subr.mxu0 0.0
        %1627 = vmatpush1.msra.mxu0 0.0
        %1628 = vmatprep.subr.mxu0 0.0
        %1629 = vmatpush1.msra.mxu0 0.0
        %1630 = vmatprep.subr.mxu0 0.0
        %1631 = vmatpush1.msra.mxu0 0.0
        %1632 = vmatprep.subr.mxu0 0.0
        %1633 = vmatpush1.msra.mxu0 0.0
        %1634 = vmatprep.subr.mxu0 0.0
        %1635 = vmatpush1.msra.mxu0 0.0
        %1636 = vmatprep.subr.mxu0 0.0
        %1637 = vmatpush1.msra.mxu0 0.0
        %1638 = vmatprep.subr.mxu0 0.0
        %1639 = vmatpush1.msra.mxu0 0.0
        %1640 = vmatprep.subr.mxu0 0.0
        %1641 = vmatpush1.msra.mxu0 0.0
        %1642 = vmatprep.subr.mxu0 0.0
        %1643 = vmatpush1.msra.mxu0 0.0
        %1644 = vmatprep.subr.mxu0 0.0
        %1645 = vmatpush1.msra.mxu0 0.0
        %1646 = vmatprep.subr.mxu0 0.0
        %1647 = vmatpush1.msra.mxu0 0.0
        %1648 = vmatprep.subr.mxu0 0.0
        %1649 = vmatpush1.msra.mxu0 0.0
        %1650 = vmatprep.subr.mxu0 0.0
        %1651 = vmatpush1.msra.mxu0 0.0
        %1652 = vmatprep.mubr.f32.mxu0 0.0
        %v1653 = vand.u32 %v1002, 4294901760
        %1654 = vmatmul.mubr.f32.gmra.mrb[0].mxu0 %v1653
        %v1655 = vpop.f32.mrb[0].mxu0
        %v1656 = vadd.f32 %v1569, %v1655
        %v1657 = vpop.f32.mrb[0].mxu0
        %1658 = vdwg.mxu0
        %v1659 = vld [vmem:[%s229] sm:$0xff]
        %v1660 = vadd.f32 %v1659, %v1656
        %1661 = vst [vmem:[%s229] sm:$0xff] %v1660
        %s1662 = sand.u32 %s104, 1
        %s1663 = scalar_lea.sflag [#allocation3], %s1662
        %s1664 = sand.u32 %s104, 1
        %s1665 = smul.addr %s1664, 8
        %s1666 = scalar_lea.vmem [#allocation2], %s1665
        // Predicated region
        $region33: #{tpu_custom_call.1} parent=27 // pred_check
          %p1667 = pneg %p114
        $region34: #{tpu_custom_call.1} parent=27 // pred_check_branch
          %1669 = sbr.rel (%p1667) target = $region36
        $region35: #{tpu_custom_call.1} parent=27 // pred_region
          %s1671 = ssub.s32 128, 128
          %1672 = vsyncadd %s1663, %s1671
          %s1673 = smul.addr %s20, 128
          %s1674 = scalar_lea.hbm %s2, %s1673
          %s1676 = sshll.u32 %s1666, 4
          %s1677 = int_to_ptr.vmem [resolvable:$true] %s1676
          %1679 = dma.vmem_to_hbm [thread:$0]  %s1677, 128, %s1674, %s1663
        $region36: #{tpu_custom_call.1} parent=27 // pred_fallthru
          _
      $region28: #{tpu_custom_call.1} parent=5 // pred_fallthru
        _
      %p1680 = scmp.le.s32.totalorder 2, %s11
      // Predicated region
      $region37: #{tpu_custom_call.1} parent=5 // pred_check
        %p1681 = pneg %p1680
      $region38: #{tpu_custom_call.1} parent=5 // pred_check_branch
        %1683 = sbr.rel (%p1681) target = $region40
      $region39: #{tpu_custom_call.1} parent=5 // pred_region
        %s1684 = ssub.s32 %s11, 2
        // Predicated region
        $region41: #{tpu_custom_call.1} parent=39 // pred_check
          %p1685 = pneg %p120
        $region42: #{tpu_custom_call.1} parent=39 // pred_check_branch
          %1687 = sbr.rel (%p1685) target = $region44
        $region43: #{tpu_custom_call.1} parent=39 // pred_region
          %s1688 = sand.u32 %s105, 1
          %s1689 = scalar_lea.sflag [#allocation3], %s1688
          %s1690 = sand.u32 %s105, 1
          %s1691 = smul.addr %s1690, 8
          %s1692 = scalar_lea.vmem [#allocation2], %s1691
          %1693 = dma.done %s1689, 128
        $region44: #{tpu_custom_call.1} parent=39 // pred_fallthru
          _
      $region40: #{tpu_custom_call.1} parent=5 // pred_fallthru
        _
    $region6: #{tpu_custom_call.1} parent=1 // loop_footer
      %s15 = sadd.s32 1, %s11
    $region7: #{tpu_custom_call.1} parent=1 // loop_footer_branch
      %10 = sbr.rel target = $region3
    $region8: #{tpu_custom_call.1} parent=1 // loop_exit
      _
    %1694 = vsyncpa [#allocation3], 1
    %s1695 = scalar_lea.sflag [#allocation3], 1
    %1696 = vsyncpa %s1695, 1

</llo_original>
